<compile_context>
chip_gen: v7x
topology: tpu7x:2x2x1
jax: 0.10.0
libtpu: 0.0.40
codegen_flags: <defaults>
</compile_context>

<pallas_src>
import functools

import jax
import jax.numpy as jnp
from jax.experimental import pallas as pl
from jax.experimental.pallas import tpu as pltpu


# Target ~4 MiB of *output* per grid step: big enough to amortize the ~0.35 us
# per-step overhead, small enough that double-buffered in+out tiles fit comfortably
# under the scoped-VMEM defaults on v5e (16 MiB) / v6e (32 MiB) / v7x (32 of 64 MiB).
_TARGET_OUT_TILE_BYTES = 4 * 1024 * 1024


def _nearest_upsample_kernel(x_ref, o_ref, *, scale: int):
    """x_ref: (TC, TH, W) input tile; o_ref: (TC, TH*scale, W*scale) output tile."""
    s = scale
    x = x_ref[...]
    tc, th, w = x.shape

    if s == 1:  # module default: exact identity
        o_ref[...] = x
        return

    # W-repeat once (output column c <- input column c // s), producing a single
    # lane-dense (TC, TH, W*s) value.
    xw = jnp.broadcast_to(x[:, :, :, None], (tc, th, w, s)).reshape(tc, th, w * s)

    # H-repeat via `s` sublane-strided stores: output rows dh, dh+s, dh+2s, ... all
    # receive xw (output row r <- input row r // s). This avoids materializing the
    # full (TH*s, W*s) intermediate in vregs/VMEM.
    for dh in range(s):  # s is small & static -> unrolled at trace time
        o_ref[:, pl.ds(dh, th, stride=s), :] = xw


def _choose_tiles(num_planes, h, w, s, itemsize, target_out_bytes):
    """Pick (TC planes per step, TH input rows per step)."""
    sub = max(8, 32 // itemsize)              # sublane multiple: 8 f32, 16 bf16, 32 int8
    out_bytes_per_in_row = s * (w * s) * itemsize
    plane_out_bytes = h * out_bytes_per_in_row

    if plane_out_bytes <= target_out_bytes:
        # Whole plane(s) per step; stack several (b, c) planes to fatten each DMA.
        th = h
        tc = max(1, min(num_planes, target_out_bytes // max(plane_out_bytes, 1)))
        # Keep >= 2 grid steps when possible (pipelining + v7x megacore sharding).
        if tc >= num_planes and num_planes > 1:
            tc = max(1, num_planes // 2)
    else:
        # Large plane: tile along H; TH multiple of the sublane granule (=> TH*s too).
        tc = 1
        th = target_out_bytes // out_bytes_per_in_row
        if th >= h:
            th = h
        else:
            th = max(sub, (th // sub) * sub)
            th = min(th, h)                   # (if h < sub, the full-dim block is legal)
    return tc, th


def upsample_nearest(x: jax.Array, scale_factor: int = 1,
                     target_out_tile_bytes: int = _TARGET_OUT_TILE_BYTES) -> jax.Array:
    """Equivalent of F.interpolate(x, scale_factor=scale_factor, mode='nearest'), NCHW."""
    # TODO(synk): only integer scale_factor is supported; PyTorch's float scale /
    # size-based nearest indexing (floor(out_idx * in/out)) is not implemented.
    assert x.ndim == 4, "expected NCHW input"
    b, c, h, w = x.shape
    s = int(scale_factor)
    assert s >= 1 and s == scale_factor, "integer scale_factor only"

    itemsize = jnp.dtype(x.dtype).itemsize
    p = b * c
    xp = x.reshape(p, h, w)                   # fuse (B, C) -> plane axis (free, contiguous)

    tc, th = _choose_tiles(p, h, w, s, itemsize, target_out_tile_bytes)
    grid = (pl.cdiv(p, tc), pl.cdiv(h, th))

    kernel = functools.partial(_nearest_upsample_kernel, scale=s)

    out = pl.pallas_call(
        kernel,
        out_shape=jax.ShapeDtypeStruct((p, h * s, w * s), x.dtype),
        grid_spec=pltpu.PrefetchScalarGridSpec(
            num_scalar_prefetch=0,
            grid=grid,
            in_specs=[pl.BlockSpec((tc, th, w), lambda pi, ti: (pi, ti, 0))],
            out_specs=pl.BlockSpec((tc, th * s, w * s), lambda pi, ti: (pi, ti, 0)),
        ),
        compiler_params=pltpu.CompilerParams(
            dimension_semantics=("parallel", "parallel"),
            vmem_limit_bytes=48 * 1024 * 1024,   # headroom; still < physical on v5e/v6e/v7x
        ),
        # Pure HBM-bandwidth op: reads N bytes, writes s^2 * N bytes, zero flops.
        cost_estimate=pl.CostEstimate(
            flops=0,
            transcendentals=0,
            bytes_accessed=(1 + s * s) * x.size * itemsize,
        ),
    )(xp)
    return out.reshape(b, c, h * s, w * s)


if __name__ == "__main__":
    key = jax.random.PRNGKey(0)

    # Small NCHW input consistent with the module's forward.
    x = jax.random.normal(key, (2, 4, 16, 16), dtype=jnp.float32)

    # scale_factor = 2 exercises a real nearest upsample.
    out = jax.block_until_ready(upsample_nearest(x, scale_factor=2))
    ref = jnp.repeat(jnp.repeat(x, 2, axis=2), 2, axis=3)
    assert out.shape == (2, 4, 32, 32)
    assert jnp.array_equal(out, ref), "mismatch vs reference (s=2)"

    # scale_factor = 1 (module default) must be an exact identity.
    out1 = jax.block_until_ready(upsample_nearest(x, scale_factor=1))
    assert jnp.array_equal(out1, x), "mismatch vs reference (s=1)"

    # Exercise the H-tiled (TH < H) strided-store path with a tiny per-step budget.
    x2 = jax.random.normal(jax.random.PRNGKey(0), (1, 2, 64, 256), dtype=jnp.float32)
    out2 = jax.block_until_ready(
        upsample_nearest(x2, scale_factor=2, target_out_tile_bytes=32 * 1024))
    ref2 = jnp.repeat(jnp.repeat(x2, 2, axis=2), 2, axis=3)
    assert out2.shape == (1, 2, 128, 512)
    assert jnp.array_equal(out2, ref2), "mismatch vs reference (tiled path)"

    print("KERNEL_OK")
</pallas_src>

<mosaic_0001>
module attributes {stable_mosaic.version = 11 : i64} {
  func.func @_nearest_upsample_kernel(%arg0: i32, %arg1: i32, %arg2: memref<4x16x16xf32, #tpu.memory_space<vmem>>, %arg3: memref<4x32x32xf32, #tpu.memory_space<vmem>>) attributes {dimension_semantics = [#tpu.dimension_semantics<parallel>, #tpu.dimension_semantics<parallel>], iteration_bounds = array<i64: 2, 1>, scalar_prefetch = 0 : i64, scratch_operands = 0 : i64, tpu.core_type = #tpu.core_type<tc>, window_params = [{transform_indices = @transform_0, window_bounds = array<i64: 4, 16, 16>}, {transform_indices = @transform_1, window_bounds = array<i64: 4, 32, 32>}]} {
    %c0 = arith.constant 0 : index
    %c0_0 = arith.constant 0 : index
    %c0_1 = arith.constant 0 : index
    %0 = vector.load %arg2[%c0, %c0_0, %c0_1] : memref<4x16x16xf32, #tpu.memory_space<vmem>>, vector<4x16x16xf32>
    %1 = vector.shape_cast %0 : vector<4x16x16xf32> to vector<4x16x16x1xf32>
    %2 = vector.shape_cast %1 : vector<4x16x16x1xf32> to vector<4x16x16x1xf32>
    %3 = vector.broadcast %2 : vector<4x16x16x1xf32> to vector<4x16x16x2xf32>
    %4 = vector.shape_cast %3 : vector<4x16x16x2xf32> to vector<4x16x32xf32>
    %c0_2 = arith.constant 0 : index
    %c0_3 = arith.constant 0 : index
    %c0_4 = arith.constant 0 : index
    %5 = tpu.strided_load %arg3[%c0_2, %c0_3, %c0_4] {strides = array<i32: 1, 2, 1>} : memref<4x32x32xf32, #tpu.memory_space<vmem>>, vector<4x16x32xf32>
    tpu.strided_store %arg3[%c0_2, %c0_3, %c0_4], %4 {strides = array<i32: 1, 2, 1>} : memref<4x32x32xf32, #tpu.memory_space<vmem>>, vector<4x16x32xf32>
    %c0_5 = arith.constant 0 : index
    %c1 = arith.constant 1 : index
    %c0_6 = arith.constant 0 : index
    %6 = tpu.strided_load %arg3[%c0_5, %c1, %c0_6] {strides = array<i32: 1, 2, 1>} : memref<4x32x32xf32, #tpu.memory_space<vmem>>, vector<4x16x32xf32>
    tpu.strided_store %arg3[%c0_5, %c1, %c0_6], %4 {strides = array<i32: 1, 2, 1>} : memref<4x32x32xf32, #tpu.memory_space<vmem>>, vector<4x16x32xf32>
    return
  }
  func.func @transform_0(%arg0: i32, %arg1: i32) -> (i32, i32, i32) {
    %c0_i32 = arith.constant 0 : i32
    %c0_i32_0 = arith.constant 0 : i32
    return %arg0, %arg1, %c0_i32 : i32, i32, i32
  }
  func.func @transform_1(%arg0: i32, %arg1: i32) -> (i32, i32, i32) {
    %c0_i32 = arith.constant 0 : i32
    %c0_i32_0 = arith.constant 0 : i32
    return %arg0, %arg1, %c0_i32 : i32, i32, i32
  }
}

</mosaic_0001>

<llo_original>
// kernel: tpu_custom_call.1
$region0: #{tpu_custom_call.1}
  #allocation0 [shape = 'u32[]', space=smem, size = 0x4, offset = 0x4, fixed_abs, tag = 'smem constant byte address 0x4 - core index']
  #allocation1 [shape = 'u32[144,128]{1,0:T(1,128)}', space=vmem, size = 0x12000, scoped, tag = 'internal scratch']
  %s0 = inlined_call_operand.hbm [shape: f32[8,16,16], index: 0, kind: input, shape index: {}]
  %s1 = inlined_call_operand.hbm [shape: f32[8,32,32], index: 1, kind: output, shape index: {}]
  %s2 = sld [smem:[#allocation0]]
  $region41: #{tpu_custom_call.1} parent=0
    _
  %s4 = ssub.s32 1, %s2
  %s5 = scalar_select 0, %s4, %s2
  $region1: #{tpu_custom_call.1} parent=0
    #allocation2 [shape = 'u8[65536]{0}', space=vmem, size = 0x10000, scoped, tag = 'input window, operand 0']
    #allocation3 [shape = 's32[2]{0}', space=sflag, size = 0x8, scoped, tag = 'scoped memory for tpu_custom_call.1']
    #allocation4 [shape = 's32[2]{0}', space=sflag, size = 0x8, scoped, tag = 'scoped memory for tpu_custom_call.1']
    #allocation5 [shape = 'u8[131072]{0}', space=vmem, size = 0x20000, scoped, tag = 'output window, operand 0']
    %6 = vsyncpa [#allocation3], 0
    %s7 = scalar_lea.sflag [#allocation3], 1
    %8 = vsyncpa %s7, 0
    %9 = vsyncpa [#allocation4], 0
    %s10 = scalar_lea.sflag [#allocation4], 1
    %11 = vsyncpa %s10, 0
    loop: start=0, step=1, limit=4
    $region2: #{tpu_custom_call.1} parent=1 // loop_pre_header
      _
    $region3: #{tpu_custom_call.1} parent=1 // loop_header
      %s13 = sphi 0, %s17
      %p14 = scmp.ge.s32.totalorder %s13, 4
      %s20 = sphi 0, %s32
      %s21 = sphi 0, %s28
      %s22 = sphi 0, %s20
      %s23 = sphi 0, %s21
      %s24 = sphi 0, %s22
      %s25 = sphi 0, %s23
      %s37 = sphi 0, %s39
      %s40 = sphi 0, %s37
      %s41 = sphi 0, %s40
      %s57 = sphi 0, %s41
      %s65 = sphi 0, %s67
      %s68 = sphi 0, %s65
      %s69 = sphi 0, %s68
      %s85 = sphi 0, %s69
    $region4: #{tpu_custom_call.1} parent=1 // loop_header_branch
      %16 = sbr.rel (%p14) target = $region8
    $region5: #{tpu_custom_call.1} parent=1 // loop_body
      %s18 = ssub.s32 %s13, 1
      %s19 = ssub.s32 %s13, 2
      %s26 = sadd.s32 1, %s21
      %p27 = scmp.ge.s32.totalorder %s26, 1
      %s28 = scalar_select %p27, 0, %s26
      %s29 = sadd.s32 1, %s20
      %s30 = scalar_select %p27, %s29, %s20
      %p31 = scmp.ge.s32.totalorder %s30, 2
      %s32 = scalar_select %p31, 0, %s30
      %s33 = ssub.s32 %s20, %s32
      %s34 = ssub.s32 %s21, %s28
      %s35 = sor.u32 %s33, %s34
      %p36 = scmp.eq.s32.totalorder %s35, 0
      %s38 = sadd.s32 %s37, 1
      %s39 = scalar_select %p36, %s37, %s38
      %p42 = pneg %p36
      %p43 = scmp.eq.s32.totalorder %s13, 1
      %p44 = por %p42, %p43
      %p45 = scmp.ne.s32.totalorder %s37, %s40
      %p46 = scmp.eq.s32.totalorder %s13, 0
      %p47 = por %p45, %p46
      %p48 = scmp.ne.s32.totalorder %s37, %s40
      %p49 = scmp.eq.s32.totalorder %s18, 1
      %p50 = por %p48, %p49
      %p51 = scmp.ne.s32.totalorder %s40, %s41
      %p52 = scmp.eq.s32.totalorder %s18, 0
      %p53 = por %p51, %p52
      %p54 = scmp.ne.s32.totalorder %s40, %s41
      %p55 = scmp.eq.s32.totalorder %s19, 1
      %p56 = por %p54, %p55
      %p58 = scmp.ne.s32.totalorder %s41, %s57
      %p59 = scmp.eq.s32.totalorder %s19, 0
      %p60 = por %p58, %p59
      %s61 = ssub.s32 %s20, %s32
      %s62 = ssub.s32 %s21, %s28
      %s63 = sor.u32 %s61, %s62
      %p64 = scmp.eq.s32.totalorder %s63, 0
      %s66 = sadd.s32 %s65, 1
      %s67 = scalar_select %p64, %s65, %s66
      %p70 = pneg %p64
      %p71 = scmp.eq.s32.totalorder %s13, 1
      %p72 = por %p70, %p71
      %p73 = scmp.ne.s32.totalorder %s65, %s68
      %p74 = scmp.eq.s32.totalorder %s13, 0
      %p75 = por %p73, %p74
      %p76 = scmp.ne.s32.totalorder %s65, %s68
      %p77 = scmp.eq.s32.totalorder %s18, 1
      %p78 = por %p76, %p77
      %p79 = scmp.ne.s32.totalorder %s68, %s69
      %p80 = scmp.eq.s32.totalorder %s18, 0
      %p81 = por %p79, %p80
      %p82 = scmp.ne.s32.totalorder %s68, %s69
      %p83 = scmp.eq.s32.totalorder %s19, 1
      %p84 = por %p82, %p83
      %p86 = scmp.ne.s32.totalorder %s69, %s85
      %p87 = scmp.eq.s32.totalorder %s19, 0
      %p88 = por %p86, %p87
      %p89 = scmp.le.s32.totalorder 1, %s13
      %p90 = scmp.lt.s32.totalorder %s13, 3
      %p91 = pnand %p89, %p90
      %p92 = pneg %p91
      // Predicated region
      $region9: #{tpu_custom_call.1} parent=5 // pred_check
        _
      $region10: #{tpu_custom_call.1} parent=5 // pred_check_branch
        %94 = sbr.rel (%p91) target = $region12
      $region11: #{tpu_custom_call.1} parent=5 // pred_region
        %s95 = ssub.s32 %s13, 1
      $region12: #{tpu_custom_call.1} parent=5 // pred_fallthru
        _
      %p96 = scmp.lt.s32.totalorder %s13, 2
      // Predicated region
      $region13: #{tpu_custom_call.1} parent=5 // pred_check
        %p97 = pneg %p96
      $region14: #{tpu_custom_call.1} parent=5 // pred_check_branch
        %99 = sbr.rel (%p97) target = $region16
      $region15: #{tpu_custom_call.1} parent=5 // pred_region
        // Predicated region
        $region17: #{tpu_custom_call.1} parent=15 // pred_check
          %p100 = pneg %p47
        $region18: #{tpu_custom_call.1} parent=15 // pred_check_branch
          %102 = sbr.rel (%p100) target = $region20
        $region19: #{tpu_custom_call.1} parent=15 // pred_region
          %s103 = sand.u32 %s37, 1
          %s104 = scalar_lea.sflag [#allocation3], %s103
          %s105 = sand.u32 %s37, 1
          %s106 = smul.addr %s105, 64
          %s107 = scalar_lea.vmem [#allocation2], %s106
          %s108 = smul.u32 4, %s20
          %s109 = smul.u32 2, %s21
          %s111 = ssub.s32 1024, 1024
          %112 = vsyncadd %s104, %s111
          %s113 = smul.addr %s108, 2
          %s114 = sadd.s32 %s109, %s113
          %s115 = smul.addr %s114, 128
          %s116 = scalar_lea.hbm %s0, %s115
          %s117 = sshll.u32 %s107, 4
          %s118 = int_to_ptr.vmem [resolvable:$true] %s117
          %123 = dma.hbm_to_vmem [thread:$0]  %s116, 1024, %s118, %s104, 128, 128, 8
        $region20: #{tpu_custom_call.1} parent=15 // pred_fallthru
          _
      $region16: #{tpu_custom_call.1} parent=5 // pred_fallthru
        _
      %p124 = scmp.le.s32.totalorder 1, %s13
      %p125 = scmp.lt.s32.totalorder %s13, 3
      %p126 = pnand %p124, %p125
      %p127 = pneg %p126
      // Predicated region
      $region21: #{tpu_custom_call.1} parent=5 // pred_check
        _
      $region22: #{tpu_custom_call.1} parent=5 // pred_check_branch
        %129 = sbr.rel (%p126) target = $region24
      $region23: #{tpu_custom_call.1} parent=5 // pred_region
        %s130 = ssub.s32 %s13, 1
        %s131 = sand.u32 %s40, 1
        %s132 = scalar_lea.sflag [#allocation3], %s131
        %s133 = sand.u32 %s40, 1
        %s134 = smul.addr %s133, 64
        %s135 = scalar_lea.vmem [#allocation2], %s134
        // Predicated region
        $region25: #{tpu_custom_call.1} parent=23 // pred_check
          %p136 = pneg %p53
        $region26: #{tpu_custom_call.1} parent=23 // pred_check_branch
          %138 = sbr.rel (%p136) target = $region28
        $region27: #{tpu_custom_call.1} parent=23 // pred_region
          %139 = dma.done %s132, 1024
        $region28: #{tpu_custom_call.1} parent=23 // pred_fallthru
          _
        %s140 = sand.u32 %s40, 1
        %s141 = scalar_lea.sflag [#allocation3], %s140
        %s142 = sand.u32 %s40, 1
        %s143 = smul.addr %s142, 64
        %s144 = scalar_lea.vmem [#allocation2], %s143
        %p145 = pneg %p53
        %p146 = pneg %p50
        %p147 = pneg %p81
        %p148 = pneg %p78
        %s149 = sand.u32 %s68, 1
        %s150 = scalar_lea.sflag [#allocation4], %s149
        %s151 = sand.u32 %s68, 1
        %s152 = smul.addr %s151, 128
        %s153 = scalar_lea.vmem [#allocation5], %s152
        %s154 = smul.u32 4, %s22
        %s155 = smul.u32 2, %s23
        %s156 = smul.u32 4, %s22
        %s157 = smul.u32 4, %s23
        %v158 = vld [vmem:[%s135] sm:$0xff]
        %v159 = vld [vmem:[%s135 + $0x8] sm:$0xff]
        %v160 = vld [vmem:[%s135 + $0x10] sm:$0xff]
        %v161 = vld [vmem:[%s135 + $0x18] sm:$0xff]
        %v162 = vld [vmem:[%s135 + $0x20] sm:$0xff]
        %v163 = vld [vmem:[%s135 + $0x28] sm:$0xff]
        %v164 = vld [vmem:[%s135 + $0x30] sm:$0xff]
        %v165 = vld [vmem:[%s135 + $0x38] sm:$0xff]
        %v166 = vlaneseq
        %v167 = vshrl.u32 %v166, 7
        %v168 = vsub.s32 0, %v167
        %v169 = vrot.slane %v158, %v168
        %171 = vbcast.lane.b32.xlu0 %v169, 256
        %v172 = vpop.permute.xlu0 %171
        %s174 = sor.u32 256, 8
        %175 = vbcast.lane.b32.xlu0 %v169, %s174
        %v176 = vpop.permute.xlu0 %175
        %v177 = vlaneseq
        %v178 = vshrl.u32 %v177, 7
        %v179 = vsub.s32 1, %v178
        %v180 = vrot.slane %v158, %v179
        %182 = vbcast.lane.b32.xlu0 %v180, 256
        %v183 = vpop.permute.xlu0 %182
        %s185 = sor.u32 256, 8
        %186 = vbcast.lane.b32.xlu0 %v180, %s185
        %v187 = vpop.permute.xlu0 %186
        %v188 = vlaneseq
        %v189 = vshrl.u32 %v188, 7
        %v190 = vsub.s32 2, %v189
        %v191 = vrot.slane %v158, %v190
        %193 = vbcast.lane.b32.xlu0 %v191, 256
        %v194 = vpop.permute.xlu0 %193
        %s196 = sor.u32 256, 8
        %197 = vbcast.lane.b32.xlu0 %v191, %s196
        %v198 = vpop.permute.xlu0 %197
        %v199 = vlaneseq
        %v200 = vshrl.u32 %v199, 7
        %v201 = vsub.s32 3, %v200
        %v202 = vrot.slane %v158, %v201
        %204 = vbcast.lane.b32.xlu0 %v202, 256
        %v205 = vpop.permute.xlu0 %204
        %s207 = sor.u32 256, 8
        %208 = vbcast.lane.b32.xlu0 %v202, %s207
        %v209 = vpop.permute.xlu0 %208
        %v210 = vlaneseq
        %v211 = vshrl.u32 %v210, 7
        %v212 = vsub.s32 4, %v211
        %v213 = vrot.slane %v158, %v212
        %215 = vbcast.lane.b32.xlu0 %v213, 256
        %v216 = vpop.permute.xlu0 %215
        %s218 = sor.u32 256, 8
        %219 = vbcast.lane.b32.xlu0 %v213, %s218
        %v220 = vpop.permute.xlu0 %219
        %v221 = vlaneseq
        %v222 = vshrl.u32 %v221, 7
        %v223 = vsub.s32 5, %v222
        %v224 = vrot.slane %v158, %v223
        %226 = vbcast.lane.b32.xlu0 %v224, 256
        %v227 = vpop.permute.xlu0 %226
        %s229 = sor.u32 256, 8
        %230 = vbcast.lane.b32.xlu0 %v224, %s229
        %v231 = vpop.permute.xlu0 %230
        %v232 = vlaneseq
        %v233 = vshrl.u32 %v232, 7
        %v234 = vsub.s32 6, %v233
        %v235 = vrot.slane %v158, %v234
        %237 = vbcast.lane.b32.xlu0 %v235, 256
        %v238 = vpop.permute.xlu0 %237
        %s240 = sor.u32 256, 8
        %241 = vbcast.lane.b32.xlu0 %v235, %s240
        %v242 = vpop.permute.xlu0 %241
        %v243 = vlaneseq
        %v244 = vshrl.u32 %v243, 7
        %v245 = vsub.s32 7, %v244
        %v246 = vrot.slane %v158, %v245
        %248 = vbcast.lane.b32.xlu0 %v246, 256
        %v249 = vpop.permute.xlu0 %248
        %s251 = sor.u32 256, 8
        %252 = vbcast.lane.b32.xlu0 %v246, %s251
        %v253 = vpop.permute.xlu0 %252
        %v254 = vlaneseq
        %v255 = vshrl.u32 %v254, 7
        %v256 = vsub.s32 0, %v255
        %v257 = vrot.slane %v159, %v256
        %259 = vbcast.lane.b32.xlu0 %v257, 256
        %v260 = vpop.permute.xlu0 %259
        %s262 = sor.u32 256, 8
        %263 = vbcast.lane.b32.xlu0 %v257, %s262
        %v264 = vpop.permute.xlu0 %263
        %v265 = vlaneseq
        %v266 = vshrl.u32 %v265, 7
        %v267 = vsub.s32 1, %v266
        %v268 = vrot.slane %v159, %v267
        %270 = vbcast.lane.b32.xlu0 %v268, 256
        %v271 = vpop.permute.xlu0 %270
        %s273 = sor.u32 256, 8
        %274 = vbcast.lane.b32.xlu0 %v268, %s273
        %v275 = vpop.permute.xlu0 %274
        %v276 = vlaneseq
        %v277 = vshrl.u32 %v276, 7
        %v278 = vsub.s32 2, %v277
        %v279 = vrot.slane %v159, %v278
        %281 = vbcast.lane.b32.xlu0 %v279, 256
        %v282 = vpop.permute.xlu0 %281
        %s284 = sor.u32 256, 8
        %285 = vbcast.lane.b32.xlu0 %v279, %s284
        %v286 = vpop.permute.xlu0 %285
        %v287 = vlaneseq
        %v288 = vshrl.u32 %v287, 7
        %v289 = vsub.s32 3, %v288
        %v290 = vrot.slane %v159, %v289
        %292 = vbcast.lane.b32.xlu0 %v290, 256
        %v293 = vpop.permute.xlu0 %292
        %s295 = sor.u32 256, 8
        %296 = vbcast.lane.b32.xlu0 %v290, %s295
        %v297 = vpop.permute.xlu0 %296
        %v298 = vlaneseq
        %v299 = vshrl.u32 %v298, 7
        %v300 = vsub.s32 4, %v299
        %v301 = vrot.slane %v159, %v300
        %303 = vbcast.lane.b32.xlu0 %v301, 256
        %v304 = vpop.permute.xlu0 %303
        %s306 = sor.u32 256, 8
        %307 = vbcast.lane.b32.xlu0 %v301, %s306
        %v308 = vpop.permute.xlu0 %307
        %v309 = vlaneseq
        %v310 = vshrl.u32 %v309, 7
        %v311 = vsub.s32 5, %v310
        %v312 = vrot.slane %v159, %v311
        %314 = vbcast.lane.b32.xlu0 %v312, 256
        %v315 = vpop.permute.xlu0 %314
        %s317 = sor.u32 256, 8
        %318 = vbcast.lane.b32.xlu0 %v312, %s317
        %v319 = vpop.permute.xlu0 %318
        %v320 = vlaneseq
        %v321 = vshrl.u32 %v320, 7
        %v322 = vsub.s32 6, %v321
        %v323 = vrot.slane %v159, %v322
        %325 = vbcast.lane.b32.xlu0 %v323, 256
        %v326 = vpop.permute.xlu0 %325
        %s328 = sor.u32 256, 8
        %329 = vbcast.lane.b32.xlu0 %v323, %s328
        %v330 = vpop.permute.xlu0 %329
        %v331 = vlaneseq
        %v332 = vshrl.u32 %v331, 7
        %v333 = vsub.s32 7, %v332
        %v334 = vrot.slane %v159, %v333
        %336 = vbcast.lane.b32.xlu0 %v334, 256
        %v337 = vpop.permute.xlu0 %336
        %s339 = sor.u32 256, 8
        %340 = vbcast.lane.b32.xlu0 %v334, %s339
        %v341 = vpop.permute.xlu0 %340
        %v342 = vlaneseq
        %v343 = vshrl.u32 %v342, 7
        %v344 = vsub.s32 0, %v343
        %v345 = vrot.slane %v160, %v344
        %347 = vbcast.lane.b32.xlu0 %v345, 256
        %v348 = vpop.permute.xlu0 %347
        %s350 = sor.u32 256, 8
        %351 = vbcast.lane.b32.xlu0 %v345, %s350
        %v352 = vpop.permute.xlu0 %351
        %v353 = vlaneseq
        %v354 = vshrl.u32 %v353, 7
        %v355 = vsub.s32 1, %v354
        %v356 = vrot.slane %v160, %v355
        %358 = vbcast.lane.b32.xlu0 %v356, 256
        %v359 = vpop.permute.xlu0 %358
        %s361 = sor.u32 256, 8
        %362 = vbcast.lane.b32.xlu0 %v356, %s361
        %v363 = vpop.permute.xlu0 %362
        %v364 = vlaneseq
        %v365 = vshrl.u32 %v364, 7
        %v366 = vsub.s32 2, %v365
        %v367 = vrot.slane %v160, %v366
        %369 = vbcast.lane.b32.xlu0 %v367, 256
        %v370 = vpop.permute.xlu0 %369
        %s372 = sor.u32 256, 8
        %373 = vbcast.lane.b32.xlu0 %v367, %s372
        %v374 = vpop.permute.xlu0 %373
        %v375 = vlaneseq
        %v376 = vshrl.u32 %v375, 7
        %v377 = vsub.s32 3, %v376
        %v378 = vrot.slane %v160, %v377
        %380 = vbcast.lane.b32.xlu0 %v378, 256
        %v381 = vpop.permute.xlu0 %380
        %s383 = sor.u32 256, 8
        %384 = vbcast.lane.b32.xlu0 %v378, %s383
        %v385 = vpop.permute.xlu0 %384
        %v386 = vlaneseq
        %v387 = vshrl.u32 %v386, 7
        %v388 = vsub.s32 4, %v387
        %v389 = vrot.slane %v160, %v388
        %391 = vbcast.lane.b32.xlu0 %v389, 256
        %v392 = vpop.permute.xlu0 %391
        %s394 = sor.u32 256, 8
        %395 = vbcast.lane.b32.xlu0 %v389, %s394
        %v396 = vpop.permute.xlu0 %395
        %v397 = vlaneseq
        %v398 = vshrl.u32 %v397, 7
        %v399 = vsub.s32 5, %v398
        %v400 = vrot.slane %v160, %v399
        %402 = vbcast.lane.b32.xlu0 %v400, 256
        %v403 = vpop.permute.xlu0 %402
        %s405 = sor.u32 256, 8
        %406 = vbcast.lane.b32.xlu0 %v400, %s405
        %v407 = vpop.permute.xlu0 %406
        %v408 = vlaneseq
        %v409 = vshrl.u32 %v408, 7
        %v410 = vsub.s32 6, %v409
        %v411 = vrot.slane %v160, %v410
        %413 = vbcast.lane.b32.xlu0 %v411, 256
        %v414 = vpop.permute.xlu0 %413
        %s416 = sor.u32 256, 8
        %417 = vbcast.lane.b32.xlu0 %v411, %s416
        %v418 = vpop.permute.xlu0 %417
        %v419 = vlaneseq
        %v420 = vshrl.u32 %v419, 7
        %v421 = vsub.s32 7, %v420
        %v422 = vrot.slane %v160, %v421
        %424 = vbcast.lane.b32.xlu0 %v422, 256
        %v425 = vpop.permute.xlu0 %424
        %s427 = sor.u32 256, 8
        %428 = vbcast.lane.b32.xlu0 %v422, %s427
        %v429 = vpop.permute.xlu0 %428
        %v430 = vlaneseq
        %v431 = vshrl.u32 %v430, 7
        %v432 = vsub.s32 0, %v431
        %v433 = vrot.slane %v161, %v432
        %435 = vbcast.lane.b32.xlu0 %v433, 256
        %v436 = vpop.permute.xlu0 %435
        %s438 = sor.u32 256, 8
        %439 = vbcast.lane.b32.xlu0 %v433, %s438
        %v440 = vpop.permute.xlu0 %439
        %v441 = vlaneseq
        %v442 = vshrl.u32 %v441, 7
        %v443 = vsub.s32 1, %v442
        %v444 = vrot.slane %v161, %v443
        %446 = vbcast.lane.b32.xlu0 %v444, 256
        %v447 = vpop.permute.xlu0 %446
        %s449 = sor.u32 256, 8
        %450 = vbcast.lane.b32.xlu0 %v444, %s449
        %v451 = vpop.permute.xlu0 %450
        %v452 = vlaneseq
        %v453 = vshrl.u32 %v452, 7
        %v454 = vsub.s32 2, %v453
        %v455 = vrot.slane %v161, %v454
        %457 = vbcast.lane.b32.xlu0 %v455, 256
        %v458 = vpop.permute.xlu0 %457
        %s460 = sor.u32 256, 8
        %461 = vbcast.lane.b32.xlu0 %v455, %s460
        %v462 = vpop.permute.xlu0 %461
        %v463 = vlaneseq
        %v464 = vshrl.u32 %v463, 7
        %v465 = vsub.s32 3, %v464
        %v466 = vrot.slane %v161, %v465
        %468 = vbcast.lane.b32.xlu0 %v466, 256
        %v469 = vpop.permute.xlu0 %468
        %s471 = sor.u32 256, 8
        %472 = vbcast.lane.b32.xlu0 %v466, %s471
        %v473 = vpop.permute.xlu0 %472
        %v474 = vlaneseq
        %v475 = vshrl.u32 %v474, 7
        %v476 = vsub.s32 4, %v475
        %v477 = vrot.slane %v161, %v476
        %479 = vbcast.lane.b32.xlu0 %v477, 256
        %v480 = vpop.permute.xlu0 %479
        %s482 = sor.u32 256, 8
        %483 = vbcast.lane.b32.xlu0 %v477, %s482
        %v484 = vpop.permute.xlu0 %483
        %v485 = vlaneseq
        %v486 = vshrl.u32 %v485, 7
        %v487 = vsub.s32 5, %v486
        %v488 = vrot.slane %v161, %v487
        %490 = vbcast.lane.b32.xlu0 %v488, 256
        %v491 = vpop.permute.xlu0 %490
        %s493 = sor.u32 256, 8
        %494 = vbcast.lane.b32.xlu0 %v488, %s493
        %v495 = vpop.permute.xlu0 %494
        %v496 = vlaneseq
        %v497 = vshrl.u32 %v496, 7
        %v498 = vsub.s32 6, %v497
        %v499 = vrot.slane %v161, %v498
        %501 = vbcast.lane.b32.xlu0 %v499, 256
        %v502 = vpop.permute.xlu0 %501
        %s504 = sor.u32 256, 8
        %505 = vbcast.lane.b32.xlu0 %v499, %s504
        %v506 = vpop.permute.xlu0 %505
        %v507 = vlaneseq
        %v508 = vshrl.u32 %v507, 7
        %v509 = vsub.s32 7, %v508
        %v510 = vrot.slane %v161, %v509
        %512 = vbcast.lane.b32.xlu0 %v510, 256
        %v513 = vpop.permute.xlu0 %512
        %s515 = sor.u32 256, 8
        %516 = vbcast.lane.b32.xlu0 %v510, %s515
        %v517 = vpop.permute.xlu0 %516
        %v518 = vlaneseq
        %v519 = vshrl.u32 %v518, 7
        %v520 = vsub.s32 0, %v519
        %v521 = vrot.slane %v162, %v520
        %523 = vbcast.lane.b32.xlu0 %v521, 256
        %v524 = vpop.permute.xlu0 %523
        %s526 = sor.u32 256, 8
        %527 = vbcast.lane.b32.xlu0 %v521, %s526
        %v528 = vpop.permute.xlu0 %527
        %v529 = vlaneseq
        %v530 = vshrl.u32 %v529, 7
        %v531 = vsub.s32 1, %v530
        %v532 = vrot.slane %v162, %v531
        %534 = vbcast.lane.b32.xlu0 %v532, 256
        %v535 = vpop.permute.xlu0 %534
        %s537 = sor.u32 256, 8
        %538 = vbcast.lane.b32.xlu0 %v532, %s537
        %v539 = vpop.permute.xlu0 %538
        %v540 = vlaneseq
        %v541 = vshrl.u32 %v540, 7
        %v542 = vsub.s32 2, %v541
        %v543 = vrot.slane %v162, %v542
        %545 = vbcast.lane.b32.xlu0 %v543, 256
        %v546 = vpop.permute.xlu0 %545
        %s548 = sor.u32 256, 8
        %549 = vbcast.lane.b32.xlu0 %v543, %s548
        %v550 = vpop.permute.xlu0 %549
        %v551 = vlaneseq
        %v552 = vshrl.u32 %v551, 7
        %v553 = vsub.s32 3, %v552
        %v554 = vrot.slane %v162, %v553
        %556 = vbcast.lane.b32.xlu0 %v554, 256
        %v557 = vpop.permute.xlu0 %556
        %s559 = sor.u32 256, 8
        %560 = vbcast.lane.b32.xlu0 %v554, %s559
        %v561 = vpop.permute.xlu0 %560
        %v562 = vlaneseq
        %v563 = vshrl.u32 %v562, 7
        %v564 = vsub.s32 4, %v563
        %v565 = vrot.slane %v162, %v564
        %567 = vbcast.lane.b32.xlu0 %v565, 256
        %v568 = vpop.permute.xlu0 %567
        %s570 = sor.u32 256, 8
        %571 = vbcast.lane.b32.xlu0 %v565, %s570
        %v572 = vpop.permute.xlu0 %571
        %v573 = vlaneseq
        %v574 = vshrl.u32 %v573, 7
        %v575 = vsub.s32 5, %v574
        %v576 = vrot.slane %v162, %v575
        %578 = vbcast.lane.b32.xlu0 %v576, 256
        %v579 = vpop.permute.xlu0 %578
        %s581 = sor.u32 256, 8
        %582 = vbcast.lane.b32.xlu0 %v576, %s581
        %v583 = vpop.permute.xlu0 %582
        %v584 = vlaneseq
        %v585 = vshrl.u32 %v584, 7
        %v586 = vsub.s32 6, %v585
        %v587 = vrot.slane %v162, %v586
        %589 = vbcast.lane.b32.xlu0 %v587, 256
        %v590 = vpop.permute.xlu0 %589
        %s592 = sor.u32 256, 8
        %593 = vbcast.lane.b32.xlu0 %v587, %s592
        %v594 = vpop.permute.xlu0 %593
        %v595 = vlaneseq
        %v596 = vshrl.u32 %v595, 7
        %v597 = vsub.s32 7, %v596
        %v598 = vrot.slane %v162, %v597
        %600 = vbcast.lane.b32.xlu0 %v598, 256
        %v601 = vpop.permute.xlu0 %600
        %s603 = sor.u32 256, 8
        %604 = vbcast.lane.b32.xlu0 %v598, %s603
        %v605 = vpop.permute.xlu0 %604
        %v606 = vlaneseq
        %v607 = vshrl.u32 %v606, 7
        %v608 = vsub.s32 0, %v607
        %v609 = vrot.slane %v163, %v608
        %611 = vbcast.lane.b32.xlu0 %v609, 256
        %v612 = vpop.permute.xlu0 %611
        %s614 = sor.u32 256, 8
        %615 = vbcast.lane.b32.xlu0 %v609, %s614
        %v616 = vpop.permute.xlu0 %615
        %v617 = vlaneseq
        %v618 = vshrl.u32 %v617, 7
        %v619 = vsub.s32 1, %v618
        %v620 = vrot.slane %v163, %v619
        %622 = vbcast.lane.b32.xlu0 %v620, 256
        %v623 = vpop.permute.xlu0 %622
        %s625 = sor.u32 256, 8
        %626 = vbcast.lane.b32.xlu0 %v620, %s625
        %v627 = vpop.permute.xlu0 %626
        %v628 = vlaneseq
        %v629 = vshrl.u32 %v628, 7
        %v630 = vsub.s32 2, %v629
        %v631 = vrot.slane %v163, %v630
        %633 = vbcast.lane.b32.xlu0 %v631, 256
        %v634 = vpop.permute.xlu0 %633
        %s636 = sor.u32 256, 8
        %637 = vbcast.lane.b32.xlu0 %v631, %s636
        %v638 = vpop.permute.xlu0 %637
        %v639 = vlaneseq
        %v640 = vshrl.u32 %v639, 7
        %v641 = vsub.s32 3, %v640
        %v642 = vrot.slane %v163, %v641
        %644 = vbcast.lane.b32.xlu0 %v642, 256
        %v645 = vpop.permute.xlu0 %644
        %s647 = sor.u32 256, 8
        %648 = vbcast.lane.b32.xlu0 %v642, %s647
        %v649 = vpop.permute.xlu0 %648
        %v650 = vlaneseq
        %v651 = vshrl.u32 %v650, 7
        %v652 = vsub.s32 4, %v651
        %v653 = vrot.slane %v163, %v652
        %655 = vbcast.lane.b32.xlu0 %v653, 256
        %v656 = vpop.permute.xlu0 %655
        %s658 = sor.u32 256, 8
        %659 = vbcast.lane.b32.xlu0 %v653, %s658
        %v660 = vpop.permute.xlu0 %659
        %v661 = vlaneseq
        %v662 = vshrl.u32 %v661, 7
        %v663 = vsub.s32 5, %v662
        %v664 = vrot.slane %v163, %v663
        %666 = vbcast.lane.b32.xlu0 %v664, 256
        %v667 = vpop.permute.xlu0 %666
        %s669 = sor.u32 256, 8
        %670 = vbcast.lane.b32.xlu0 %v664, %s669
        %v671 = vpop.permute.xlu0 %670
        %v672 = vlaneseq
        %v673 = vshrl.u32 %v672, 7
        %v674 = vsub.s32 6, %v673
        %v675 = vrot.slane %v163, %v674
        %677 = vbcast.lane.b32.xlu0 %v675, 256
        %v678 = vpop.permute.xlu0 %677
        %s680 = sor.u32 256, 8
        %681 = vbcast.lane.b32.xlu0 %v675, %s680
        %v682 = vpop.permute.xlu0 %681
        %v683 = vlaneseq
        %v684 = vshrl.u32 %v683, 7
        %v685 = vsub.s32 7, %v684
        %v686 = vrot.slane %v163, %v685
        %688 = vbcast.lane.b32.xlu0 %v686, 256
        %v689 = vpop.permute.xlu0 %688
        %s691 = sor.u32 256, 8
        %692 = vbcast.lane.b32.xlu0 %v686, %s691
        %v693 = vpop.permute.xlu0 %692
        %v694 = vlaneseq
        %v695 = vshrl.u32 %v694, 7
        %v696 = vsub.s32 0, %v695
        %v697 = vrot.slane %v164, %v696
        %699 = vbcast.lane.b32.xlu0 %v697, 256
        %v700 = vpop.permute.xlu0 %699
        %s702 = sor.u32 256, 8
        %703 = vbcast.lane.b32.xlu0 %v697, %s702
        %v704 = vpop.permute.xlu0 %703
        %v705 = vlaneseq
        %v706 = vshrl.u32 %v705, 7
        %v707 = vsub.s32 1, %v706
        %v708 = vrot.slane %v164, %v707
        %710 = vbcast.lane.b32.xlu0 %v708, 256
        %v711 = vpop.permute.xlu0 %710
        %s713 = sor.u32 256, 8
        %714 = vbcast.lane.b32.xlu0 %v708, %s713
        %v715 = vpop.permute.xlu0 %714
        %v716 = vlaneseq
        %v717 = vshrl.u32 %v716, 7
        %v718 = vsub.s32 2, %v717
        %v719 = vrot.slane %v164, %v718
        %721 = vbcast.lane.b32.xlu0 %v719, 256
        %v722 = vpop.permute.xlu0 %721
        %s724 = sor.u32 256, 8
        %725 = vbcast.lane.b32.xlu0 %v719, %s724
        %v726 = vpop.permute.xlu0 %725
        %v727 = vlaneseq
        %v728 = vshrl.u32 %v727, 7
        %v729 = vsub.s32 3, %v728
        %v730 = vrot.slane %v164, %v729
        %732 = vbcast.lane.b32.xlu0 %v730, 256
        %v733 = vpop.permute.xlu0 %732
        %s735 = sor.u32 256, 8
        %736 = vbcast.lane.b32.xlu0 %v730, %s735
        %v737 = vpop.permute.xlu0 %736
        %v738 = vlaneseq
        %v739 = vshrl.u32 %v738, 7
        %v740 = vsub.s32 4, %v739
        %v741 = vrot.slane %v164, %v740
        %743 = vbcast.lane.b32.xlu0 %v741, 256
        %v744 = vpop.permute.xlu0 %743
        %s746 = sor.u32 256, 8
        %747 = vbcast.lane.b32.xlu0 %v741, %s746
        %v748 = vpop.permute.xlu0 %747
        %v749 = vlaneseq
        %v750 = vshrl.u32 %v749, 7
        %v751 = vsub.s32 5, %v750
        %v752 = vrot.slane %v164, %v751
        %754 = vbcast.lane.b32.xlu0 %v752, 256
        %v755 = vpop.permute.xlu0 %754
        %s757 = sor.u32 256, 8
        %758 = vbcast.lane.b32.xlu0 %v752, %s757
        %v759 = vpop.permute.xlu0 %758
        %v760 = vlaneseq
        %v761 = vshrl.u32 %v760, 7
        %v762 = vsub.s32 6, %v761
        %v763 = vrot.slane %v164, %v762
        %765 = vbcast.lane.b32.xlu0 %v763, 256
        %v766 = vpop.permute.xlu0 %765
        %s768 = sor.u32 256, 8
        %769 = vbcast.lane.b32.xlu0 %v763, %s768
        %v770 = vpop.permute.xlu0 %769
        %v771 = vlaneseq
        %v772 = vshrl.u32 %v771, 7
        %v773 = vsub.s32 7, %v772
        %v774 = vrot.slane %v164, %v773
        %776 = vbcast.lane.b32.xlu0 %v774, 256
        %v777 = vpop.permute.xlu0 %776
        %s779 = sor.u32 256, 8
        %780 = vbcast.lane.b32.xlu0 %v774, %s779
        %v781 = vpop.permute.xlu0 %780
        %v782 = vlaneseq
        %v783 = vshrl.u32 %v782, 7
        %v784 = vsub.s32 0, %v783
        %v785 = vrot.slane %v165, %v784
        %787 = vbcast.lane.b32.xlu0 %v785, 256
        %v788 = vpop.permute.xlu0 %787
        %s790 = sor.u32 256, 8
        %791 = vbcast.lane.b32.xlu0 %v785, %s790
        %v792 = vpop.permute.xlu0 %791
        %v793 = vlaneseq
        %v794 = vshrl.u32 %v793, 7
        %v795 = vsub.s32 1, %v794
        %v796 = vrot.slane %v165, %v795
        %798 = vbcast.lane.b32.xlu0 %v796, 256
        %v799 = vpop.permute.xlu0 %798
        %s801 = sor.u32 256, 8
        %802 = vbcast.lane.b32.xlu0 %v796, %s801
        %v803 = vpop.permute.xlu0 %802
        %v804 = vlaneseq
        %v805 = vshrl.u32 %v804, 7
        %v806 = vsub.s32 2, %v805
        %v807 = vrot.slane %v165, %v806
        %809 = vbcast.lane.b32.xlu0 %v807, 256
        %v810 = vpop.permute.xlu0 %809
        %s812 = sor.u32 256, 8
        %813 = vbcast.lane.b32.xlu0 %v807, %s812
        %v814 = vpop.permute.xlu0 %813
        %v815 = vlaneseq
        %v816 = vshrl.u32 %v815, 7
        %v817 = vsub.s32 3, %v816
        %v818 = vrot.slane %v165, %v817
        %820 = vbcast.lane.b32.xlu0 %v818, 256
        %v821 = vpop.permute.xlu0 %820
        %s823 = sor.u32 256, 8
        %824 = vbcast.lane.b32.xlu0 %v818, %s823
        %v825 = vpop.permute.xlu0 %824
        %v826 = vlaneseq
        %v827 = vshrl.u32 %v826, 7
        %v828 = vsub.s32 4, %v827
        %v829 = vrot.slane %v165, %v828
        %831 = vbcast.lane.b32.xlu0 %v829, 256
        %v832 = vpop.permute.xlu0 %831
        %s834 = sor.u32 256, 8
        %835 = vbcast.lane.b32.xlu0 %v829, %s834
        %v836 = vpop.permute.xlu0 %835
        %v837 = vlaneseq
        %v838 = vshrl.u32 %v837, 7
        %v839 = vsub.s32 5, %v838
        %v840 = vrot.slane %v165, %v839
        %842 = vbcast.lane.b32.xlu0 %v840, 256
        %v843 = vpop.permute.xlu0 %842
        %s845 = sor.u32 256, 8
        %846 = vbcast.lane.b32.xlu0 %v840, %s845
        %v847 = vpop.permute.xlu0 %846
        %v848 = vlaneseq
        %v849 = vshrl.u32 %v848, 7
        %v850 = vsub.s32 6, %v849
        %v851 = vrot.slane %v165, %v850
        %853 = vbcast.lane.b32.xlu0 %v851, 256
        %v854 = vpop.permute.xlu0 %853
        %s856 = sor.u32 256, 8
        %857 = vbcast.lane.b32.xlu0 %v851, %s856
        %v858 = vpop.permute.xlu0 %857
        %v859 = vlaneseq
        %v860 = vshrl.u32 %v859, 7
        %v861 = vsub.s32 7, %v860
        %v862 = vrot.slane %v165, %v861
        %864 = vbcast.lane.b32.xlu0 %v862, 256
        %v865 = vpop.permute.xlu0 %864
        %s867 = sor.u32 256, 8
        %868 = vbcast.lane.b32.xlu0 %v862, %s867
        %v869 = vpop.permute.xlu0 %868
        %v870 = vcombine.low %v172, %v194
        %v871 = vcombine.high %v172, %v194
        %v873 = vunpack.c.l.s4 1983009808
        %v874 = vunpack.c.0.s8 %v873
        %v875 = vlaneseq
        %v876 = vshrl.u32 %v875, 7
        %v877 = vsub.s32 %v874, %v876
        %v878 = vrot.slane %v870, %v877
        %v880 = vunpack.c.l.s4 1983009808
        %v881 = vunpack.c.0.s8 %v880
        %v882 = vlaneseq
        %v883 = vshrl.u32 %v882, 7
        %v884 = vsub.s32 %v881, %v883
        %v885 = vrot.slane %v871, %v884
        %v886 = vcombine.low %v183, %v205
        %v887 = vcombine.high %v183, %v205
        %v889 = vunpack.c.l.s4 1983009808
        %v890 = vunpack.c.0.s8 %v889
        %v891 = vlaneseq
        %v892 = vshrl.u32 %v891, 7
        %v893 = vsub.s32 %v890, %v892
        %v894 = vrot.slane %v886, %v893
        %v896 = vunpack.c.l.s4 1983009808
        %v897 = vunpack.c.0.s8 %v896
        %v898 = vlaneseq
        %v899 = vshrl.u32 %v898, 7
        %v900 = vsub.s32 %v897, %v899
        %v901 = vrot.slane %v887, %v900
        %v902 = vcombine.low %v216, %v238
        %v903 = vcombine.high %v216, %v238
        %v905 = vunpack.c.l.s4 1983009808
        %v906 = vunpack.c.0.s8 %v905
        %v907 = vlaneseq
        %v908 = vshrl.u32 %v907, 7
        %v909 = vsub.s32 %v906, %v908
        %v910 = vrot.slane %v902, %v909
        %v912 = vunpack.c.l.s4 1983009808
        %v913 = vunpack.c.0.s8 %v912
        %v914 = vlaneseq
        %v915 = vshrl.u32 %v914, 7
        %v916 = vsub.s32 %v913, %v915
        %v917 = vrot.slane %v903, %v916
        %v918 = vcombine.low %v227, %v249
        %v919 = vcombine.high %v227, %v249
        %v921 = vunpack.c.l.s4 1983009808
        %v922 = vunpack.c.0.s8 %v921
        %v923 = vlaneseq
        %v924 = vshrl.u32 %v923, 7
        %v925 = vsub.s32 %v922, %v924
        %v926 = vrot.slane %v918, %v925
        %v928 = vunpack.c.l.s4 1983009808
        %v929 = vunpack.c.0.s8 %v928
        %v930 = vlaneseq
        %v931 = vshrl.u32 %v930, 7
        %v932 = vsub.s32 %v929, %v931
        %v933 = vrot.slane %v919, %v932
        %v934 = vcombine.low %v878, %v894
        %v935 = vcombine.high %v878, %v894
        %v937 = vunpack.c.l.s4 1934713408
        %v938 = vunpack.c.0.s8 %v937
        %v939 = vlaneseq
        %v940 = vshrl.u32 %v939, 7
        %v941 = vsub.s32 %v938, %v940
        %v942 = vrot.slane %v934, %v941
        %v944 = vunpack.c.l.s4 1934713408
        %v945 = vunpack.c.0.s8 %v944
        %v946 = vlaneseq
        %v947 = vshrl.u32 %v946, 7
        %v948 = vsub.s32 %v945, %v947
        %v949 = vrot.slane %v935, %v948
        %v950 = vcombine.low %v885, %v901
        %v951 = vcombine.high %v885, %v901
        %v953 = vunpack.c.l.s4 1934713408
        %v954 = vunpack.c.0.s8 %v953
        %v955 = vlaneseq
        %v956 = vshrl.u32 %v955, 7
        %v957 = vsub.s32 %v954, %v956
        %v958 = vrot.slane %v950, %v957
        %v960 = vunpack.c.l.s4 1934713408
        %v961 = vunpack.c.0.s8 %v960
        %v962 = vlaneseq
        %v963 = vshrl.u32 %v962, 7
        %v964 = vsub.s32 %v961, %v963
        %v965 = vrot.slane %v951, %v964
        %v966 = vcombine.low %v910, %v926
        %v967 = vcombine.high %v910, %v926
        %v969 = vunpack.c.l.s4 1934713408
        %v970 = vunpack.c.0.s8 %v969
        %v971 = vlaneseq
        %v972 = vshrl.u32 %v971, 7
        %v973 = vsub.s32 %v970, %v972
        %v974 = vrot.slane %v966, %v973
        %v976 = vunpack.c.l.s4 1934713408
        %v977 = vunpack.c.0.s8 %v976
        %v978 = vlaneseq
        %v979 = vshrl.u32 %v978, 7
        %v980 = vsub.s32 %v977, %v979
        %v981 = vrot.slane %v967, %v980
        %v982 = vcombine.low %v917, %v933
        %v983 = vcombine.high %v917, %v933
        %v985 = vunpack.c.l.s4 1934713408
        %v986 = vunpack.c.0.s8 %v985
        %v987 = vlaneseq
        %v988 = vshrl.u32 %v987, 7
        %v989 = vsub.s32 %v986, %v988
        %v990 = vrot.slane %v982, %v989
        %v992 = vunpack.c.l.s4 1934713408
        %v993 = vunpack.c.0.s8 %v992
        %v994 = vlaneseq
        %v995 = vshrl.u32 %v994, 7
        %v996 = vsub.s32 %v993, %v995
        %v997 = vrot.slane %v983, %v996
        %v998 = vcombine.low %v942, %v974
        %v999 = vcombine.high %v942, %v974
        %v1000 = vcombine.low %v949, %v981
        %v1001 = vcombine.high %v949, %v981
        %v1002 = vcombine.low %v958, %v990
        %v1003 = vcombine.high %v958, %v990
        %v1004 = vcombine.low %v965, %v997
        %v1005 = vcombine.high %v965, %v997
        %v1006 = vcombine.low %v260, %v282
        %v1007 = vcombine.high %v260, %v282
        %v1009 = vunpack.c.l.s4 1983009808
        %v1010 = vunpack.c.0.s8 %v1009
        %v1011 = vlaneseq
        %v1012 = vshrl.u32 %v1011, 7
        %v1013 = vsub.s32 %v1010, %v1012
        %v1014 = vrot.slane %v1006, %v1013
        %v1016 = vunpack.c.l.s4 1983009808
        %v1017 = vunpack.c.0.s8 %v1016
        %v1018 = vlaneseq
        %v1019 = vshrl.u32 %v1018, 7
        %v1020 = vsub.s32 %v1017, %v1019
        %v1021 = vrot.slane %v1007, %v1020
        %v1022 = vcombine.low %v271, %v293
        %v1023 = vcombine.high %v271, %v293
        %v1025 = vunpack.c.l.s4 1983009808
        %v1026 = vunpack.c.0.s8 %v1025
        %v1027 = vlaneseq
        %v1028 = vshrl.u32 %v1027, 7
        %v1029 = vsub.s32 %v1026, %v1028
        %v1030 = vrot.slane %v1022, %v1029
        %v1032 = vunpack.c.l.s4 1983009808
        %v1033 = vunpack.c.0.s8 %v1032
        %v1034 = vlaneseq
        %v1035 = vshrl.u32 %v1034, 7
        %v1036 = vsub.s32 %v1033, %v1035
        %v1037 = vrot.slane %v1023, %v1036
        %v1038 = vcombine.low %v304, %v326
        %v1039 = vcombine.high %v304, %v326
        %v1041 = vunpack.c.l.s4 1983009808
        %v1042 = vunpack.c.0.s8 %v1041
        %v1043 = vlaneseq
        %v1044 = vshrl.u32 %v1043, 7
        %v1045 = vsub.s32 %v1042, %v1044
        %v1046 = vrot.slane %v1038, %v1045
        %v1048 = vunpack.c.l.s4 1983009808
        %v1049 = vunpack.c.0.s8 %v1048
        %v1050 = vlaneseq
        %v1051 = vshrl.u32 %v1050, 7
        %v1052 = vsub.s32 %v1049, %v1051
        %v1053 = vrot.slane %v1039, %v1052
        %v1054 = vcombine.low %v315, %v337
        %v1055 = vcombine.high %v315, %v337
        %v1057 = vunpack.c.l.s4 1983009808
        %v1058 = vunpack.c.0.s8 %v1057
        %v1059 = vlaneseq
        %v1060 = vshrl.u32 %v1059, 7
        %v1061 = vsub.s32 %v1058, %v1060
        %v1062 = vrot.slane %v1054, %v1061
        %v1064 = vunpack.c.l.s4 1983009808
        %v1065 = vunpack.c.0.s8 %v1064
        %v1066 = vlaneseq
        %v1067 = vshrl.u32 %v1066, 7
        %v1068 = vsub.s32 %v1065, %v1067
        %v1069 = vrot.slane %v1055, %v1068
        %v1070 = vcombine.low %v1014, %v1030
        %v1071 = vcombine.high %v1014, %v1030
        %v1073 = vunpack.c.l.s4 1934713408
        %v1074 = vunpack.c.0.s8 %v1073
        %v1075 = vlaneseq
        %v1076 = vshrl.u32 %v1075, 7
        %v1077 = vsub.s32 %v1074, %v1076
        %v1078 = vrot.slane %v1070, %v1077
        %v1080 = vunpack.c.l.s4 1934713408
        %v1081 = vunpack.c.0.s8 %v1080
        %v1082 = vlaneseq
        %v1083 = vshrl.u32 %v1082, 7
        %v1084 = vsub.s32 %v1081, %v1083
        %v1085 = vrot.slane %v1071, %v1084
        %v1086 = vcombine.low %v1021, %v1037
        %v1087 = vcombine.high %v1021, %v1037
        %v1089 = vunpack.c.l.s4 1934713408
        %v1090 = vunpack.c.0.s8 %v1089
        %v1091 = vlaneseq
        %v1092 = vshrl.u32 %v1091, 7
        %v1093 = vsub.s32 %v1090, %v1092
        %v1094 = vrot.slane %v1086, %v1093
        %v1096 = vunpack.c.l.s4 1934713408
        %v1097 = vunpack.c.0.s8 %v1096
        %v1098 = vlaneseq
        %v1099 = vshrl.u32 %v1098, 7
        %v1100 = vsub.s32 %v1097, %v1099
        %v1101 = vrot.slane %v1087, %v1100
        %v1102 = vcombine.low %v1046, %v1062
        %v1103 = vcombine.high %v1046, %v1062
        %v1105 = vunpack.c.l.s4 1934713408
        %v1106 = vunpack.c.0.s8 %v1105
        %v1107 = vlaneseq
        %v1108 = vshrl.u32 %v1107, 7
        %v1109 = vsub.s32 %v1106, %v1108
        %v1110 = vrot.slane %v1102, %v1109
        %v1112 = vunpack.c.l.s4 1934713408
        %v1113 = vunpack.c.0.s8 %v1112
        %v1114 = vlaneseq
        %v1115 = vshrl.u32 %v1114, 7
        %v1116 = vsub.s32 %v1113, %v1115
        %v1117 = vrot.slane %v1103, %v1116
        %v1118 = vcombine.low %v1053, %v1069
        %v1119 = vcombine.high %v1053, %v1069
        %v1121 = vunpack.c.l.s4 1934713408
        %v1122 = vunpack.c.0.s8 %v1121
        %v1123 = vlaneseq
        %v1124 = vshrl.u32 %v1123, 7
        %v1125 = vsub.s32 %v1122, %v1124
        %v1126 = vrot.slane %v1118, %v1125
        %v1128 = vunpack.c.l.s4 1934713408
        %v1129 = vunpack.c.0.s8 %v1128
        %v1130 = vlaneseq
        %v1131 = vshrl.u32 %v1130, 7
        %v1132 = vsub.s32 %v1129, %v1131
        %v1133 = vrot.slane %v1119, %v1132
        %v1134 = vcombine.low %v1078, %v1110
        %v1135 = vcombine.high %v1078, %v1110
        %v1136 = vcombine.low %v1085, %v1117
        %v1137 = vcombine.high %v1085, %v1117
        %v1138 = vcombine.low %v1094, %v1126
        %v1139 = vcombine.high %v1094, %v1126
        %v1140 = vcombine.low %v1101, %v1133
        %v1141 = vcombine.high %v1101, %v1133
        %v1142 = vcombine.low %v176, %v198
        %v1143 = vcombine.high %v176, %v198
        %v1145 = vunpack.c.l.s4 1983009808
        %v1146 = vunpack.c.0.s8 %v1145
        %v1147 = vlaneseq
        %v1148 = vshrl.u32 %v1147, 7
        %v1149 = vsub.s32 %v1146, %v1148
        %v1150 = vrot.slane %v1142, %v1149
        %v1152 = vunpack.c.l.s4 1983009808
        %v1153 = vunpack.c.0.s8 %v1152
        %v1154 = vlaneseq
        %v1155 = vshrl.u32 %v1154, 7
        %v1156 = vsub.s32 %v1153, %v1155
        %v1157 = vrot.slane %v1143, %v1156
        %v1158 = vcombine.low %v187, %v209
        %v1159 = vcombine.high %v187, %v209
        %v1161 = vunpack.c.l.s4 1983009808
        %v1162 = vunpack.c.0.s8 %v1161
        %v1163 = vlaneseq
        %v1164 = vshrl.u32 %v1163, 7
        %v1165 = vsub.s32 %v1162, %v1164
        %v1166 = vrot.slane %v1158, %v1165
        %v1168 = vunpack.c.l.s4 1983009808
        %v1169 = vunpack.c.0.s8 %v1168
        %v1170 = vlaneseq
        %v1171 = vshrl.u32 %v1170, 7
        %v1172 = vsub.s32 %v1169, %v1171
        %v1173 = vrot.slane %v1159, %v1172
        %v1174 = vcombine.low %v220, %v242
        %v1175 = vcombine.high %v220, %v242
        %v1177 = vunpack.c.l.s4 1983009808
        %v1178 = vunpack.c.0.s8 %v1177
        %v1179 = vlaneseq
        %v1180 = vshrl.u32 %v1179, 7
        %v1181 = vsub.s32 %v1178, %v1180
        %v1182 = vrot.slane %v1174, %v1181
        %v1184 = vunpack.c.l.s4 1983009808
        %v1185 = vunpack.c.0.s8 %v1184
        %v1186 = vlaneseq
        %v1187 = vshrl.u32 %v1186, 7
        %v1188 = vsub.s32 %v1185, %v1187
        %v1189 = vrot.slane %v1175, %v1188
        %v1190 = vcombine.low %v231, %v253
        %v1191 = vcombine.high %v231, %v253
        %v1193 = vunpack.c.l.s4 1983009808
        %v1194 = vunpack.c.0.s8 %v1193
        %v1195 = vlaneseq
        %v1196 = vshrl.u32 %v1195, 7
        %v1197 = vsub.s32 %v1194, %v1196
        %v1198 = vrot.slane %v1190, %v1197
        %v1200 = vunpack.c.l.s4 1983009808
        %v1201 = vunpack.c.0.s8 %v1200
        %v1202 = vlaneseq
        %v1203 = vshrl.u32 %v1202, 7
        %v1204 = vsub.s32 %v1201, %v1203
        %v1205 = vrot.slane %v1191, %v1204
        %v1206 = vcombine.low %v1150, %v1166
        %v1207 = vcombine.high %v1150, %v1166
        %v1209 = vunpack.c.l.s4 1934713408
        %v1210 = vunpack.c.0.s8 %v1209
        %v1211 = vlaneseq
        %v1212 = vshrl.u32 %v1211, 7
        %v1213 = vsub.s32 %v1210, %v1212
        %v1214 = vrot.slane %v1206, %v1213
        %v1216 = vunpack.c.l.s4 1934713408
        %v1217 = vunpack.c.0.s8 %v1216
        %v1218 = vlaneseq
        %v1219 = vshrl.u32 %v1218, 7
        %v1220 = vsub.s32 %v1217, %v1219
        %v1221 = vrot.slane %v1207, %v1220
        %v1222 = vcombine.low %v1157, %v1173
        %v1223 = vcombine.high %v1157, %v1173
        %v1225 = vunpack.c.l.s4 1934713408
        %v1226 = vunpack.c.0.s8 %v1225
        %v1227 = vlaneseq
        %v1228 = vshrl.u32 %v1227, 7
        %v1229 = vsub.s32 %v1226, %v1228
        %v1230 = vrot.slane %v1222, %v1229
        %v1232 = vunpack.c.l.s4 1934713408
        %v1233 = vunpack.c.0.s8 %v1232
        %v1234 = vlaneseq
        %v1235 = vshrl.u32 %v1234, 7
        %v1236 = vsub.s32 %v1233, %v1235
        %v1237 = vrot.slane %v1223, %v1236
        %v1238 = vcombine.low %v1182, %v1198
        %v1239 = vcombine.high %v1182, %v1198
        %v1241 = vunpack.c.l.s4 1934713408
        %v1242 = vunpack.c.0.s8 %v1241
        %v1243 = vlaneseq
        %v1244 = vshrl.u32 %v1243, 7
        %v1245 = vsub.s32 %v1242, %v1244
        %v1246 = vrot.slane %v1238, %v1245
        %v1248 = vunpack.c.l.s4 1934713408
        %v1249 = vunpack.c.0.s8 %v1248
        %v1250 = vlaneseq
        %v1251 = vshrl.u32 %v1250, 7
        %v1252 = vsub.s32 %v1249, %v1251
        %v1253 = vrot.slane %v1239, %v1252
        %v1254 = vcombine.low %v1189, %v1205
        %v1255 = vcombine.high %v1189, %v1205
        %v1257 = vunpack.c.l.s4 1934713408
        %v1258 = vunpack.c.0.s8 %v1257
        %v1259 = vlaneseq
        %v1260 = vshrl.u32 %v1259, 7
        %v1261 = vsub.s32 %v1258, %v1260
        %v1262 = vrot.slane %v1254, %v1261
        %v1264 = vunpack.c.l.s4 1934713408
        %v1265 = vunpack.c.0.s8 %v1264
        %v1266 = vlaneseq
        %v1267 = vshrl.u32 %v1266, 7
        %v1268 = vsub.s32 %v1265, %v1267
        %v1269 = vrot.slane %v1255, %v1268
        %v1270 = vcombine.low %v1214, %v1246
        %v1271 = vcombine.high %v1214, %v1246
        %v1272 = vcombine.low %v1221, %v1253
        %v1273 = vcombine.high %v1221, %v1253
        %v1274 = vcombine.low %v1230, %v1262
        %v1275 = vcombine.high %v1230, %v1262
        %v1276 = vcombine.low %v1237, %v1269
        %v1277 = vcombine.high %v1237, %v1269
        %v1278 = vcombine.low %v264, %v286
        %v1279 = vcombine.high %v264, %v286
        %v1281 = vunpack.c.l.s4 1983009808
        %v1282 = vunpack.c.0.s8 %v1281
        %v1283 = vlaneseq
        %v1284 = vshrl.u32 %v1283, 7
        %v1285 = vsub.s32 %v1282, %v1284
        %v1286 = vrot.slane %v1278, %v1285
        %v1288 = vunpack.c.l.s4 1983009808
        %v1289 = vunpack.c.0.s8 %v1288
        %v1290 = vlaneseq
        %v1291 = vshrl.u32 %v1290, 7
        %v1292 = vsub.s32 %v1289, %v1291
        %v1293 = vrot.slane %v1279, %v1292
        %v1294 = vcombine.low %v275, %v297
        %v1295 = vcombine.high %v275, %v297
        %v1297 = vunpack.c.l.s4 1983009808
        %v1298 = vunpack.c.0.s8 %v1297
        %v1299 = vlaneseq
        %v1300 = vshrl.u32 %v1299, 7
        %v1301 = vsub.s32 %v1298, %v1300
        %v1302 = vrot.slane %v1294, %v1301
        %v1304 = vunpack.c.l.s4 1983009808
        %v1305 = vunpack.c.0.s8 %v1304
        %v1306 = vlaneseq
        %v1307 = vshrl.u32 %v1306, 7
        %v1308 = vsub.s32 %v1305, %v1307
        %v1309 = vrot.slane %v1295, %v1308
        %v1310 = vcombine.low %v308, %v330
        %v1311 = vcombine.high %v308, %v330
        %v1313 = vunpack.c.l.s4 1983009808
        %v1314 = vunpack.c.0.s8 %v1313
        %v1315 = vlaneseq
        %v1316 = vshrl.u32 %v1315, 7
        %v1317 = vsub.s32 %v1314, %v1316
        %v1318 = vrot.slane %v1310, %v1317
        %v1320 = vunpack.c.l.s4 1983009808
        %v1321 = vunpack.c.0.s8 %v1320
        %v1322 = vlaneseq
        %v1323 = vshrl.u32 %v1322, 7
        %v1324 = vsub.s32 %v1321, %v1323
        %v1325 = vrot.slane %v1311, %v1324
        %v1326 = vcombine.low %v319, %v341
        %v1327 = vcombine.high %v319, %v341
        %v1329 = vunpack.c.l.s4 1983009808
        %v1330 = vunpack.c.0.s8 %v1329
        %v1331 = vlaneseq
        %v1332 = vshrl.u32 %v1331, 7
        %v1333 = vsub.s32 %v1330, %v1332
        %v1334 = vrot.slane %v1326, %v1333
        %v1336 = vunpack.c.l.s4 1983009808
        %v1337 = vunpack.c.0.s8 %v1336
        %v1338 = vlaneseq
        %v1339 = vshrl.u32 %v1338, 7
        %v1340 = vsub.s32 %v1337, %v1339
        %v1341 = vrot.slane %v1327, %v1340
        %v1342 = vcombine.low %v1286, %v1302
        %v1343 = vcombine.high %v1286, %v1302
        %v1345 = vunpack.c.l.s4 1934713408
        %v1346 = vunpack.c.0.s8 %v1345
        %v1347 = vlaneseq
        %v1348 = vshrl.u32 %v1347, 7
        %v1349 = vsub.s32 %v1346, %v1348
        %v1350 = vrot.slane %v1342, %v1349
        %v1352 = vunpack.c.l.s4 1934713408
        %v1353 = vunpack.c.0.s8 %v1352
        %v1354 = vlaneseq
        %v1355 = vshrl.u32 %v1354, 7
        %v1356 = vsub.s32 %v1353, %v1355
        %v1357 = vrot.slane %v1343, %v1356
        %v1358 = vcombine.low %v1293, %v1309
        %v1359 = vcombine.high %v1293, %v1309
        %v1361 = vunpack.c.l.s4 1934713408
        %v1362 = vunpack.c.0.s8 %v1361
        %v1363 = vlaneseq
        %v1364 = vshrl.u32 %v1363, 7
        %v1365 = vsub.s32 %v1362, %v1364
        %v1366 = vrot.slane %v1358, %v1365
        %v1368 = vunpack.c.l.s4 1934713408
        %v1369 = vunpack.c.0.s8 %v1368
        %v1370 = vlaneseq
        %v1371 = vshrl.u32 %v1370, 7
        %v1372 = vsub.s32 %v1369, %v1371
        %v1373 = vrot.slane %v1359, %v1372
        %v1374 = vcombine.low %v1318, %v1334
        %v1375 = vcombine.high %v1318, %v1334
        %v1377 = vunpack.c.l.s4 1934713408
        %v1378 = vunpack.c.0.s8 %v1377
        %v1379 = vlaneseq
        %v1380 = vshrl.u32 %v1379, 7
        %v1381 = vsub.s32 %v1378, %v1380
        %v1382 = vrot.slane %v1374, %v1381
        %v1384 = vunpack.c.l.s4 1934713408
        %v1385 = vunpack.c.0.s8 %v1384
        %v1386 = vlaneseq
        %v1387 = vshrl.u32 %v1386, 7
        %v1388 = vsub.s32 %v1385, %v1387
        %v1389 = vrot.slane %v1375, %v1388
        %v1390 = vcombine.low %v1325, %v1341
        %v1391 = vcombine.high %v1325, %v1341
        %v1393 = vunpack.c.l.s4 1934713408
        %v1394 = vunpack.c.0.s8 %v1393
        %v1395 = vlaneseq
        %v1396 = vshrl.u32 %v1395, 7
        %v1397 = vsub.s32 %v1394, %v1396
        %v1398 = vrot.slane %v1390, %v1397
        %v1400 = vunpack.c.l.s4 1934713408
        %v1401 = vunpack.c.0.s8 %v1400
        %v1402 = vlaneseq
        %v1403 = vshrl.u32 %v1402, 7
        %v1404 = vsub.s32 %v1401, %v1403
        %v1405 = vrot.slane %v1391, %v1404
        %v1406 = vcombine.low %v1350, %v1382
        %v1407 = vcombine.high %v1350, %v1382
        %v1408 = vcombine.low %v1357, %v1389
        %v1409 = vcombine.high %v1357, %v1389
        %v1410 = vcombine.low %v1366, %v1398
        %v1411 = vcombine.high %v1366, %v1398
        %v1412 = vcombine.low %v1373, %v1405
        %v1413 = vcombine.high %v1373, %v1405
        %v1414 = vcombine.low %v348, %v370
        %v1415 = vcombine.high %v348, %v370
        %v1417 = vunpack.c.l.s4 1983009808
        %v1418 = vunpack.c.0.s8 %v1417
        %v1419 = vlaneseq
        %v1420 = vshrl.u32 %v1419, 7
        %v1421 = vsub.s32 %v1418, %v1420
        %v1422 = vrot.slane %v1414, %v1421
        %v1424 = vunpack.c.l.s4 1983009808
        %v1425 = vunpack.c.0.s8 %v1424
        %v1426 = vlaneseq
        %v1427 = vshrl.u32 %v1426, 7
        %v1428 = vsub.s32 %v1425, %v1427
        %v1429 = vrot.slane %v1415, %v1428
        %v1430 = vcombine.low %v359, %v381
        %v1431 = vcombine.high %v359, %v381
        %v1433 = vunpack.c.l.s4 1983009808
        %v1434 = vunpack.c.0.s8 %v1433
        %v1435 = vlaneseq
        %v1436 = vshrl.u32 %v1435, 7
        %v1437 = vsub.s32 %v1434, %v1436
        %v1438 = vrot.slane %v1430, %v1437
        %v1440 = vunpack.c.l.s4 1983009808
        %v1441 = vunpack.c.0.s8 %v1440
        %v1442 = vlaneseq
        %v1443 = vshrl.u32 %v1442, 7
        %v1444 = vsub.s32 %v1441, %v1443
        %v1445 = vrot.slane %v1431, %v1444
        %v1446 = vcombine.low %v392, %v414
        %v1447 = vcombine.high %v392, %v414
        %v1449 = vunpack.c.l.s4 1983009808
        %v1450 = vunpack.c.0.s8 %v1449
        %v1451 = vlaneseq
        %v1452 = vshrl.u32 %v1451, 7
        %v1453 = vsub.s32 %v1450, %v1452
        %v1454 = vrot.slane %v1446, %v1453
        %v1456 = vunpack.c.l.s4 1983009808
        %v1457 = vunpack.c.0.s8 %v1456
        %v1458 = vlaneseq
        %v1459 = vshrl.u32 %v1458, 7
        %v1460 = vsub.s32 %v1457, %v1459
        %v1461 = vrot.slane %v1447, %v1460
        %v1462 = vcombine.low %v403, %v425
        %v1463 = vcombine.high %v403, %v425
        %v1465 = vunpack.c.l.s4 1983009808
        %v1466 = vunpack.c.0.s8 %v1465
        %v1467 = vlaneseq
        %v1468 = vshrl.u32 %v1467, 7
        %v1469 = vsub.s32 %v1466, %v1468
        %v1470 = vrot.slane %v1462, %v1469
        %v1472 = vunpack.c.l.s4 1983009808
        %v1473 = vunpack.c.0.s8 %v1472
        %v1474 = vlaneseq
        %v1475 = vshrl.u32 %v1474, 7
        %v1476 = vsub.s32 %v1473, %v1475
        %v1477 = vrot.slane %v1463, %v1476
        %v1478 = vcombine.low %v1422, %v1438
        %v1479 = vcombine.high %v1422, %v1438
        %v1481 = vunpack.c.l.s4 1934713408
        %v1482 = vunpack.c.0.s8 %v1481
        %v1483 = vlaneseq
        %v1484 = vshrl.u32 %v1483, 7
        %v1485 = vsub.s32 %v1482, %v1484
        %v1486 = vrot.slane %v1478, %v1485
        %v1488 = vunpack.c.l.s4 1934713408
        %v1489 = vunpack.c.0.s8 %v1488
        %v1490 = vlaneseq
        %v1491 = vshrl.u32 %v1490, 7
        %v1492 = vsub.s32 %v1489, %v1491
        %v1493 = vrot.slane %v1479, %v1492
        %v1494 = vcombine.low %v1429, %v1445
        %v1495 = vcombine.high %v1429, %v1445
        %v1497 = vunpack.c.l.s4 1934713408
        %v1498 = vunpack.c.0.s8 %v1497
        %v1499 = vlaneseq
        %v1500 = vshrl.u32 %v1499, 7
        %v1501 = vsub.s32 %v1498, %v1500
        %v1502 = vrot.slane %v1494, %v1501
        %v1504 = vunpack.c.l.s4 1934713408
        %v1505 = vunpack.c.0.s8 %v1504
        %v1506 = vlaneseq
        %v1507 = vshrl.u32 %v1506, 7
        %v1508 = vsub.s32 %v1505, %v1507
        %v1509 = vrot.slane %v1495, %v1508
        %v1510 = vcombine.low %v1454, %v1470
        %v1511 = vcombine.high %v1454, %v1470
        %v1513 = vunpack.c.l.s4 1934713408
        %v1514 = vunpack.c.0.s8 %v1513
        %v1515 = vlaneseq
        %v1516 = vshrl.u32 %v1515, 7
        %v1517 = vsub.s32 %v1514, %v1516
        %v1518 = vrot.slane %v1510, %v1517
        %v1520 = vunpack.c.l.s4 1934713408
        %v1521 = vunpack.c.0.s8 %v1520
        %v1522 = vlaneseq
        %v1523 = vshrl.u32 %v1522, 7
        %v1524 = vsub.s32 %v1521, %v1523
        %v1525 = vrot.slane %v1511, %v1524
        %v1526 = vcombine.low %v1461, %v1477
        %v1527 = vcombine.high %v1461, %v1477
        %v1529 = vunpack.c.l.s4 1934713408
        %v1530 = vunpack.c.0.s8 %v1529
        %v1531 = vlaneseq
        %v1532 = vshrl.u32 %v1531, 7
        %v1533 = vsub.s32 %v1530, %v1532
        %v1534 = vrot.slane %v1526, %v1533
        %v1536 = vunpack.c.l.s4 1934713408
        %v1537 = vunpack.c.0.s8 %v1536
        %v1538 = vlaneseq
        %v1539 = vshrl.u32 %v1538, 7
        %v1540 = vsub.s32 %v1537, %v1539
        %v1541 = vrot.slane %v1527, %v1540
        %v1542 = vcombine.low %v1486, %v1518
        %v1543 = vcombine.high %v1486, %v1518
        %v1544 = vcombine.low %v1493, %v1525
        %v1545 = vcombine.high %v1493, %v1525
        %v1546 = vcombine.low %v1502, %v1534
        %v1547 = vcombine.high %v1502, %v1534
        %v1548 = vcombine.low %v1509, %v1541
        %v1549 = vcombine.high %v1509, %v1541
        %v1550 = vcombine.low %v436, %v458
        %v1551 = vcombine.high %v436, %v458
        %v1553 = vunpack.c.l.s4 1983009808
        %v1554 = vunpack.c.0.s8 %v1553
        %v1555 = vlaneseq
        %v1556 = vshrl.u32 %v1555, 7
        %v1557 = vsub.s32 %v1554, %v1556
        %v1558 = vrot.slane %v1550, %v1557
        %v1560 = vunpack.c.l.s4 1983009808
        %v1561 = vunpack.c.0.s8 %v1560
        %v1562 = vlaneseq
        %v1563 = vshrl.u32 %v1562, 7
        %v1564 = vsub.s32 %v1561, %v1563
        %v1565 = vrot.slane %v1551, %v1564
        %v1566 = vcombine.low %v447, %v469
        %v1567 = vcombine.high %v447, %v469
        %v1569 = vunpack.c.l.s4 1983009808
        %v1570 = vunpack.c.0.s8 %v1569
        %v1571 = vlaneseq
        %v1572 = vshrl.u32 %v1571, 7
        %v1573 = vsub.s32 %v1570, %v1572
        %v1574 = vrot.slane %v1566, %v1573
        %v1576 = vunpack.c.l.s4 1983009808
        %v1577 = vunpack.c.0.s8 %v1576
        %v1578 = vlaneseq
        %v1579 = vshrl.u32 %v1578, 7
        %v1580 = vsub.s32 %v1577, %v1579
        %v1581 = vrot.slane %v1567, %v1580
        %v1582 = vcombine.low %v480, %v502
        %v1583 = vcombine.high %v480, %v502
        %v1585 = vunpack.c.l.s4 1983009808
        %v1586 = vunpack.c.0.s8 %v1585
        %v1587 = vlaneseq
        %v1588 = vshrl.u32 %v1587, 7
        %v1589 = vsub.s32 %v1586, %v1588
        %v1590 = vrot.slane %v1582, %v1589
        %v1592 = vunpack.c.l.s4 1983009808
        %v1593 = vunpack.c.0.s8 %v1592
        %v1594 = vlaneseq
        %v1595 = vshrl.u32 %v1594, 7
        %v1596 = vsub.s32 %v1593, %v1595
        %v1597 = vrot.slane %v1583, %v1596
        %v1598 = vcombine.low %v491, %v513
        %v1599 = vcombine.high %v491, %v513
        %v1601 = vunpack.c.l.s4 1983009808
        %v1602 = vunpack.c.0.s8 %v1601
        %v1603 = vlaneseq
        %v1604 = vshrl.u32 %v1603, 7
        %v1605 = vsub.s32 %v1602, %v1604
        %v1606 = vrot.slane %v1598, %v1605
        %v1608 = vunpack.c.l.s4 1983009808
        %v1609 = vunpack.c.0.s8 %v1608
        %v1610 = vlaneseq
        %v1611 = vshrl.u32 %v1610, 7
        %v1612 = vsub.s32 %v1609, %v1611
        %v1613 = vrot.slane %v1599, %v1612
        %v1614 = vcombine.low %v1558, %v1574
        %v1615 = vcombine.high %v1558, %v1574
        %v1617 = vunpack.c.l.s4 1934713408
        %v1618 = vunpack.c.0.s8 %v1617
        %v1619 = vlaneseq
        %v1620 = vshrl.u32 %v1619, 7
        %v1621 = vsub.s32 %v1618, %v1620
        %v1622 = vrot.slane %v1614, %v1621
        %v1624 = vunpack.c.l.s4 1934713408
        %v1625 = vunpack.c.0.s8 %v1624
        %v1626 = vlaneseq
        %v1627 = vshrl.u32 %v1626, 7
        %v1628 = vsub.s32 %v1625, %v1627
        %v1629 = vrot.slane %v1615, %v1628
        %v1630 = vcombine.low %v1565, %v1581
        %v1631 = vcombine.high %v1565, %v1581
        %v1633 = vunpack.c.l.s4 1934713408
        %v1634 = vunpack.c.0.s8 %v1633
        %v1635 = vlaneseq
        %v1636 = vshrl.u32 %v1635, 7
        %v1637 = vsub.s32 %v1634, %v1636
        %v1638 = vrot.slane %v1630, %v1637
        %v1640 = vunpack.c.l.s4 1934713408
        %v1641 = vunpack.c.0.s8 %v1640
        %v1642 = vlaneseq
        %v1643 = vshrl.u32 %v1642, 7
        %v1644 = vsub.s32 %v1641, %v1643
        %v1645 = vrot.slane %v1631, %v1644
        %v1646 = vcombine.low %v1590, %v1606
        %v1647 = vcombine.high %v1590, %v1606
        %v1649 = vunpack.c.l.s4 1934713408
        %v1650 = vunpack.c.0.s8 %v1649
        %v1651 = vlaneseq
        %v1652 = vshrl.u32 %v1651, 7
        %v1653 = vsub.s32 %v1650, %v1652
        %v1654 = vrot.slane %v1646, %v1653
        %v1656 = vunpack.c.l.s4 1934713408
        %v1657 = vunpack.c.0.s8 %v1656
        %v1658 = vlaneseq
        %v1659 = vshrl.u32 %v1658, 7
        %v1660 = vsub.s32 %v1657, %v1659
        %v1661 = vrot.slane %v1647, %v1660
        %v1662 = vcombine.low %v1597, %v1613
        %v1663 = vcombine.high %v1597, %v1613
        %v1665 = vunpack.c.l.s4 1934713408
        %v1666 = vunpack.c.0.s8 %v1665
        %v1667 = vlaneseq
        %v1668 = vshrl.u32 %v1667, 7
        %v1669 = vsub.s32 %v1666, %v1668
        %v1670 = vrot.slane %v1662, %v1669
        %v1672 = vunpack.c.l.s4 1934713408
        %v1673 = vunpack.c.0.s8 %v1672
        %v1674 = vlaneseq
        %v1675 = vshrl.u32 %v1674, 7
        %v1676 = vsub.s32 %v1673, %v1675
        %v1677 = vrot.slane %v1663, %v1676
        %v1678 = vcombine.low %v1622, %v1654
        %v1679 = vcombine.high %v1622, %v1654
        %v1680 = vcombine.low %v1629, %v1661
        %v1681 = vcombine.high %v1629, %v1661
        %v1682 = vcombine.low %v1638, %v1670
        %v1683 = vcombine.high %v1638, %v1670
        %v1684 = vcombine.low %v1645, %v1677
        %v1685 = vcombine.high %v1645, %v1677
        %v1686 = vcombine.low %v352, %v374
        %v1687 = vcombine.high %v352, %v374
        %v1689 = vunpack.c.l.s4 1983009808
        %v1690 = vunpack.c.0.s8 %v1689
        %v1691 = vlaneseq
        %v1692 = vshrl.u32 %v1691, 7
        %v1693 = vsub.s32 %v1690, %v1692
        %v1694 = vrot.slane %v1686, %v1693
        %v1696 = vunpack.c.l.s4 1983009808
        %v1697 = vunpack.c.0.s8 %v1696
        %v1698 = vlaneseq
        %v1699 = vshrl.u32 %v1698, 7
        %v1700 = vsub.s32 %v1697, %v1699
        %v1701 = vrot.slane %v1687, %v1700
        %v1702 = vcombine.low %v363, %v385
        %v1703 = vcombine.high %v363, %v385
        %v1705 = vunpack.c.l.s4 1983009808
        %v1706 = vunpack.c.0.s8 %v1705
        %v1707 = vlaneseq
        %v1708 = vshrl.u32 %v1707, 7
        %v1709 = vsub.s32 %v1706, %v1708
        %v1710 = vrot.slane %v1702, %v1709
        %v1712 = vunpack.c.l.s4 1983009808
        %v1713 = vunpack.c.0.s8 %v1712
        %v1714 = vlaneseq
        %v1715 = vshrl.u32 %v1714, 7
        %v1716 = vsub.s32 %v1713, %v1715
        %v1717 = vrot.slane %v1703, %v1716
        %v1718 = vcombine.low %v396, %v418
        %v1719 = vcombine.high %v396, %v418
        %v1721 = vunpack.c.l.s4 1983009808
        %v1722 = vunpack.c.0.s8 %v1721
        %v1723 = vlaneseq
        %v1724 = vshrl.u32 %v1723, 7
        %v1725 = vsub.s32 %v1722, %v1724
        %v1726 = vrot.slane %v1718, %v1725
        %v1728 = vunpack.c.l.s4 1983009808
        %v1729 = vunpack.c.0.s8 %v1728
        %v1730 = vlaneseq
        %v1731 = vshrl.u32 %v1730, 7
        %v1732 = vsub.s32 %v1729, %v1731
        %v1733 = vrot.slane %v1719, %v1732
        %v1734 = vcombine.low %v407, %v429
        %v1735 = vcombine.high %v407, %v429
        %v1737 = vunpack.c.l.s4 1983009808
        %v1738 = vunpack.c.0.s8 %v1737
        %v1739 = vlaneseq
        %v1740 = vshrl.u32 %v1739, 7
        %v1741 = vsub.s32 %v1738, %v1740
        %v1742 = vrot.slane %v1734, %v1741
        %v1744 = vunpack.c.l.s4 1983009808
        %v1745 = vunpack.c.0.s8 %v1744
        %v1746 = vlaneseq
        %v1747 = vshrl.u32 %v1746, 7
        %v1748 = vsub.s32 %v1745, %v1747
        %v1749 = vrot.slane %v1735, %v1748
        %v1750 = vcombine.low %v1694, %v1710
        %v1751 = vcombine.high %v1694, %v1710
        %v1753 = vunpack.c.l.s4 1934713408
        %v1754 = vunpack.c.0.s8 %v1753
        %v1755 = vlaneseq
        %v1756 = vshrl.u32 %v1755, 7
        %v1757 = vsub.s32 %v1754, %v1756
        %v1758 = vrot.slane %v1750, %v1757
        %v1760 = vunpack.c.l.s4 1934713408
        %v1761 = vunpack.c.0.s8 %v1760
        %v1762 = vlaneseq
        %v1763 = vshrl.u32 %v1762, 7
        %v1764 = vsub.s32 %v1761, %v1763
        %v1765 = vrot.slane %v1751, %v1764
        %v1766 = vcombine.low %v1701, %v1717
        %v1767 = vcombine.high %v1701, %v1717
        %v1769 = vunpack.c.l.s4 1934713408
        %v1770 = vunpack.c.0.s8 %v1769
        %v1771 = vlaneseq
        %v1772 = vshrl.u32 %v1771, 7
        %v1773 = vsub.s32 %v1770, %v1772
        %v1774 = vrot.slane %v1766, %v1773
        %v1776 = vunpack.c.l.s4 1934713408
        %v1777 = vunpack.c.0.s8 %v1776
        %v1778 = vlaneseq
        %v1779 = vshrl.u32 %v1778, 7
        %v1780 = vsub.s32 %v1777, %v1779
        %v1781 = vrot.slane %v1767, %v1780
        %v1782 = vcombine.low %v1726, %v1742
        %v1783 = vcombine.high %v1726, %v1742
        %v1785 = vunpack.c.l.s4 1934713408
        %v1786 = vunpack.c.0.s8 %v1785
        %v1787 = vlaneseq
        %v1788 = vshrl.u32 %v1787, 7
        %v1789 = vsub.s32 %v1786, %v1788
        %v1790 = vrot.slane %v1782, %v1789
        %v1792 = vunpack.c.l.s4 1934713408
        %v1793 = vunpack.c.0.s8 %v1792
        %v1794 = vlaneseq
        %v1795 = vshrl.u32 %v1794, 7
        %v1796 = vsub.s32 %v1793, %v1795
        %v1797 = vrot.slane %v1783, %v1796
        %v1798 = vcombine.low %v1733, %v1749
        %v1799 = vcombine.high %v1733, %v1749
        %v1801 = vunpack.c.l.s4 1934713408
        %v1802 = vunpack.c.0.s8 %v1801
        %v1803 = vlaneseq
        %v1804 = vshrl.u32 %v1803, 7
        %v1805 = vsub.s32 %v1802, %v1804
        %v1806 = vrot.slane %v1798, %v1805
        %v1808 = vunpack.c.l.s4 1934713408
        %v1809 = vunpack.c.0.s8 %v1808
        %v1810 = vlaneseq
        %v1811 = vshrl.u32 %v1810, 7
        %v1812 = vsub.s32 %v1809, %v1811
        %v1813 = vrot.slane %v1799, %v1812
        %v1814 = vcombine.low %v1758, %v1790
        %v1815 = vcombine.high %v1758, %v1790
        %v1816 = vcombine.low %v1765, %v1797
        %v1817 = vcombine.high %v1765, %v1797
        %v1818 = vcombine.low %v1774, %v1806
        %v1819 = vcombine.high %v1774, %v1806
        %v1820 = vcombine.low %v1781, %v1813
        %v1821 = vcombine.high %v1781, %v1813
        %v1822 = vcombine.low %v440, %v462
        %v1823 = vcombine.high %v440, %v462
        %v1825 = vunpack.c.l.s4 1983009808
        %v1826 = vunpack.c.0.s8 %v1825
        %v1827 = vlaneseq
        %v1828 = vshrl.u32 %v1827, 7
        %v1829 = vsub.s32 %v1826, %v1828
        %v1830 = vrot.slane %v1822, %v1829
        %v1832 = vunpack.c.l.s4 1983009808
        %v1833 = vunpack.c.0.s8 %v1832
        %v1834 = vlaneseq
        %v1835 = vshrl.u32 %v1834, 7
        %v1836 = vsub.s32 %v1833, %v1835
        %v1837 = vrot.slane %v1823, %v1836
        %v1838 = vcombine.low %v451, %v473
        %v1839 = vcombine.high %v451, %v473
        %v1841 = vunpack.c.l.s4 1983009808
        %v1842 = vunpack.c.0.s8 %v1841
        %v1843 = vlaneseq
        %v1844 = vshrl.u32 %v1843, 7
        %v1845 = vsub.s32 %v1842, %v1844
        %v1846 = vrot.slane %v1838, %v1845
        %v1848 = vunpack.c.l.s4 1983009808
        %v1849 = vunpack.c.0.s8 %v1848
        %v1850 = vlaneseq
        %v1851 = vshrl.u32 %v1850, 7
        %v1852 = vsub.s32 %v1849, %v1851
        %v1853 = vrot.slane %v1839, %v1852
        %v1854 = vcombine.low %v484, %v506
        %v1855 = vcombine.high %v484, %v506
        %v1857 = vunpack.c.l.s4 1983009808
        %v1858 = vunpack.c.0.s8 %v1857
        %v1859 = vlaneseq
        %v1860 = vshrl.u32 %v1859, 7
        %v1861 = vsub.s32 %v1858, %v1860
        %v1862 = vrot.slane %v1854, %v1861
        %v1864 = vunpack.c.l.s4 1983009808
        %v1865 = vunpack.c.0.s8 %v1864
        %v1866 = vlaneseq
        %v1867 = vshrl.u32 %v1866, 7
        %v1868 = vsub.s32 %v1865, %v1867
        %v1869 = vrot.slane %v1855, %v1868
        %v1870 = vcombine.low %v495, %v517
        %v1871 = vcombine.high %v495, %v517
        %v1873 = vunpack.c.l.s4 1983009808
        %v1874 = vunpack.c.0.s8 %v1873
        %v1875 = vlaneseq
        %v1876 = vshrl.u32 %v1875, 7
        %v1877 = vsub.s32 %v1874, %v1876
        %v1878 = vrot.slane %v1870, %v1877
        %v1880 = vunpack.c.l.s4 1983009808
        %v1881 = vunpack.c.0.s8 %v1880
        %v1882 = vlaneseq
        %v1883 = vshrl.u32 %v1882, 7
        %v1884 = vsub.s32 %v1881, %v1883
        %v1885 = vrot.slane %v1871, %v1884
        %v1886 = vcombine.low %v1830, %v1846
        %v1887 = vcombine.high %v1830, %v1846
        %v1889 = vunpack.c.l.s4 1934713408
        %v1890 = vunpack.c.0.s8 %v1889
        %v1891 = vlaneseq
        %v1892 = vshrl.u32 %v1891, 7
        %v1893 = vsub.s32 %v1890, %v1892
        %v1894 = vrot.slane %v1886, %v1893
        %v1896 = vunpack.c.l.s4 1934713408
        %v1897 = vunpack.c.0.s8 %v1896
        %v1898 = vlaneseq
        %v1899 = vshrl.u32 %v1898, 7
        %v1900 = vsub.s32 %v1897, %v1899
        %v1901 = vrot.slane %v1887, %v1900
        %v1902 = vcombine.low %v1837, %v1853
        %v1903 = vcombine.high %v1837, %v1853
        %v1905 = vunpack.c.l.s4 1934713408
        %v1906 = vunpack.c.0.s8 %v1905
        %v1907 = vlaneseq
        %v1908 = vshrl.u32 %v1907, 7
        %v1909 = vsub.s32 %v1906, %v1908
        %v1910 = vrot.slane %v1902, %v1909
        %v1912 = vunpack.c.l.s4 1934713408
        %v1913 = vunpack.c.0.s8 %v1912
        %v1914 = vlaneseq
        %v1915 = vshrl.u32 %v1914, 7
        %v1916 = vsub.s32 %v1913, %v1915
        %v1917 = vrot.slane %v1903, %v1916
        %v1918 = vcombine.low %v1862, %v1878
        %v1919 = vcombine.high %v1862, %v1878
        %v1921 = vunpack.c.l.s4 1934713408
        %v1922 = vunpack.c.0.s8 %v1921
        %v1923 = vlaneseq
        %v1924 = vshrl.u32 %v1923, 7
        %v1925 = vsub.s32 %v1922, %v1924
        %v1926 = vrot.slane %v1918, %v1925
        %v1928 = vunpack.c.l.s4 1934713408
        %v1929 = vunpack.c.0.s8 %v1928
        %v1930 = vlaneseq
        %v1931 = vshrl.u32 %v1930, 7
        %v1932 = vsub.s32 %v1929, %v1931
        %v1933 = vrot.slane %v1919, %v1932
        %v1934 = vcombine.low %v1869, %v1885
        %v1935 = vcombine.high %v1869, %v1885
        %v1937 = vunpack.c.l.s4 1934713408
        %v1938 = vunpack.c.0.s8 %v1937
        %v1939 = vlaneseq
        %v1940 = vshrl.u32 %v1939, 7
        %v1941 = vsub.s32 %v1938, %v1940
        %v1942 = vrot.slane %v1934, %v1941
        %v1944 = vunpack.c.l.s4 1934713408
        %v1945 = vunpack.c.0.s8 %v1944
        %v1946 = vlaneseq
        %v1947 = vshrl.u32 %v1946, 7
        %v1948 = vsub.s32 %v1945, %v1947
        %v1949 = vrot.slane %v1935, %v1948
        %v1950 = vcombine.low %v1894, %v1926
        %v1951 = vcombine.high %v1894, %v1926
        %v1952 = vcombine.low %v1901, %v1933
        %v1953 = vcombine.high %v1901, %v1933
        %v1954 = vcombine.low %v1910, %v1942
        %v1955 = vcombine.high %v1910, %v1942
        %v1956 = vcombine.low %v1917, %v1949
        %v1957 = vcombine.high %v1917, %v1949
        %v1958 = vcombine.low %v524, %v546
        %v1959 = vcombine.high %v524, %v546
        %v1961 = vunpack.c.l.s4 1983009808
        %v1962 = vunpack.c.0.s8 %v1961
        %v1963 = vlaneseq
        %v1964 = vshrl.u32 %v1963, 7
        %v1965 = vsub.s32 %v1962, %v1964
        %v1966 = vrot.slane %v1958, %v1965
        %v1968 = vunpack.c.l.s4 1983009808
        %v1969 = vunpack.c.0.s8 %v1968
        %v1970 = vlaneseq
        %v1971 = vshrl.u32 %v1970, 7
        %v1972 = vsub.s32 %v1969, %v1971
        %v1973 = vrot.slane %v1959, %v1972
        %v1974 = vcombine.low %v535, %v557
        %v1975 = vcombine.high %v535, %v557
        %v1977 = vunpack.c.l.s4 1983009808
        %v1978 = vunpack.c.0.s8 %v1977
        %v1979 = vlaneseq
        %v1980 = vshrl.u32 %v1979, 7
        %v1981 = vsub.s32 %v1978, %v1980
        %v1982 = vrot.slane %v1974, %v1981
        %v1984 = vunpack.c.l.s4 1983009808
        %v1985 = vunpack.c.0.s8 %v1984
        %v1986 = vlaneseq
        %v1987 = vshrl.u32 %v1986, 7
        %v1988 = vsub.s32 %v1985, %v1987
        %v1989 = vrot.slane %v1975, %v1988
        %v1990 = vcombine.low %v568, %v590
        %v1991 = vcombine.high %v568, %v590
        %v1993 = vunpack.c.l.s4 1983009808
        %v1994 = vunpack.c.0.s8 %v1993
        %v1995 = vlaneseq
        %v1996 = vshrl.u32 %v1995, 7
        %v1997 = vsub.s32 %v1994, %v1996
        %v1998 = vrot.slane %v1990, %v1997
        %v2000 = vunpack.c.l.s4 1983009808
        %v2001 = vunpack.c.0.s8 %v2000
        %v2002 = vlaneseq
        %v2003 = vshrl.u32 %v2002, 7
        %v2004 = vsub.s32 %v2001, %v2003
        %v2005 = vrot.slane %v1991, %v2004
        %v2006 = vcombine.low %v579, %v601
        %v2007 = vcombine.high %v579, %v601
        %v2009 = vunpack.c.l.s4 1983009808
        %v2010 = vunpack.c.0.s8 %v2009
        %v2011 = vlaneseq
        %v2012 = vshrl.u32 %v2011, 7
        %v2013 = vsub.s32 %v2010, %v2012
        %v2014 = vrot.slane %v2006, %v2013
        %v2016 = vunpack.c.l.s4 1983009808
        %v2017 = vunpack.c.0.s8 %v2016
        %v2018 = vlaneseq
        %v2019 = vshrl.u32 %v2018, 7
        %v2020 = vsub.s32 %v2017, %v2019
        %v2021 = vrot.slane %v2007, %v2020
        %v2022 = vcombine.low %v1966, %v1982
        %v2023 = vcombine.high %v1966, %v1982
        %v2025 = vunpack.c.l.s4 1934713408
        %v2026 = vunpack.c.0.s8 %v2025
        %v2027 = vlaneseq
        %v2028 = vshrl.u32 %v2027, 7
        %v2029 = vsub.s32 %v2026, %v2028
        %v2030 = vrot.slane %v2022, %v2029
        %v2032 = vunpack.c.l.s4 1934713408
        %v2033 = vunpack.c.0.s8 %v2032
        %v2034 = vlaneseq
        %v2035 = vshrl.u32 %v2034, 7
        %v2036 = vsub.s32 %v2033, %v2035
        %v2037 = vrot.slane %v2023, %v2036
        %v2038 = vcombine.low %v1973, %v1989
        %v2039 = vcombine.high %v1973, %v1989
        %v2041 = vunpack.c.l.s4 1934713408
        %v2042 = vunpack.c.0.s8 %v2041
        %v2043 = vlaneseq
        %v2044 = vshrl.u32 %v2043, 7
        %v2045 = vsub.s32 %v2042, %v2044
        %v2046 = vrot.slane %v2038, %v2045
        %v2048 = vunpack.c.l.s4 1934713408
        %v2049 = vunpack.c.0.s8 %v2048
        %v2050 = vlaneseq
        %v2051 = vshrl.u32 %v2050, 7
        %v2052 = vsub.s32 %v2049, %v2051
        %v2053 = vrot.slane %v2039, %v2052
        %v2054 = vcombine.low %v1998, %v2014
        %v2055 = vcombine.high %v1998, %v2014
        %v2057 = vunpack.c.l.s4 1934713408
        %v2058 = vunpack.c.0.s8 %v2057
        %v2059 = vlaneseq
        %v2060 = vshrl.u32 %v2059, 7
        %v2061 = vsub.s32 %v2058, %v2060
        %v2062 = vrot.slane %v2054, %v2061
        %v2064 = vunpack.c.l.s4 1934713408
        %v2065 = vunpack.c.0.s8 %v2064
        %v2066 = vlaneseq
        %v2067 = vshrl.u32 %v2066, 7
        %v2068 = vsub.s32 %v2065, %v2067
        %v2069 = vrot.slane %v2055, %v2068
        %v2070 = vcombine.low %v2005, %v2021
        %v2071 = vcombine.high %v2005, %v2021
        %v2073 = vunpack.c.l.s4 1934713408
        %v2074 = vunpack.c.0.s8 %v2073
        %v2075 = vlaneseq
        %v2076 = vshrl.u32 %v2075, 7
        %v2077 = vsub.s32 %v2074, %v2076
        %v2078 = vrot.slane %v2070, %v2077
        %v2080 = vunpack.c.l.s4 1934713408
        %v2081 = vunpack.c.0.s8 %v2080
        %v2082 = vlaneseq
        %v2083 = vshrl.u32 %v2082, 7
        %v2084 = vsub.s32 %v2081, %v2083
        %v2085 = vrot.slane %v2071, %v2084
        %v2086 = vcombine.low %v2030, %v2062
        %v2087 = vcombine.high %v2030, %v2062
        %v2088 = vcombine.low %v2037, %v2069
        %v2089 = vcombine.high %v2037, %v2069
        %v2090 = vcombine.low %v2046, %v2078
        %v2091 = vcombine.high %v2046, %v2078
        %v2092 = vcombine.low %v2053, %v2085
        %v2093 = vcombine.high %v2053, %v2085
        %v2094 = vcombine.low %v612, %v634
        %v2095 = vcombine.high %v612, %v634
        %v2097 = vunpack.c.l.s4 1983009808
        %v2098 = vunpack.c.0.s8 %v2097
        %v2099 = vlaneseq
        %v2100 = vshrl.u32 %v2099, 7
        %v2101 = vsub.s32 %v2098, %v2100
        %v2102 = vrot.slane %v2094, %v2101
        %v2104 = vunpack.c.l.s4 1983009808
        %v2105 = vunpack.c.0.s8 %v2104
        %v2106 = vlaneseq
        %v2107 = vshrl.u32 %v2106, 7
        %v2108 = vsub.s32 %v2105, %v2107
        %v2109 = vrot.slane %v2095, %v2108
        %v2110 = vcombine.low %v623, %v645
        %v2111 = vcombine.high %v623, %v645
        %v2113 = vunpack.c.l.s4 1983009808
        %v2114 = vunpack.c.0.s8 %v2113
        %v2115 = vlaneseq
        %v2116 = vshrl.u32 %v2115, 7
        %v2117 = vsub.s32 %v2114, %v2116
        %v2118 = vrot.slane %v2110, %v2117
        %v2120 = vunpack.c.l.s4 1983009808
        %v2121 = vunpack.c.0.s8 %v2120
        %v2122 = vlaneseq
        %v2123 = vshrl.u32 %v2122, 7
        %v2124 = vsub.s32 %v2121, %v2123
        %v2125 = vrot.slane %v2111, %v2124
        %v2126 = vcombine.low %v656, %v678
        %v2127 = vcombine.high %v656, %v678
        %v2129 = vunpack.c.l.s4 1983009808
        %v2130 = vunpack.c.0.s8 %v2129
        %v2131 = vlaneseq
        %v2132 = vshrl.u32 %v2131, 7
        %v2133 = vsub.s32 %v2130, %v2132
        %v2134 = vrot.slane %v2126, %v2133
        %v2136 = vunpack.c.l.s4 1983009808
        %v2137 = vunpack.c.0.s8 %v2136
        %v2138 = vlaneseq
        %v2139 = vshrl.u32 %v2138, 7
        %v2140 = vsub.s32 %v2137, %v2139
        %v2141 = vrot.slane %v2127, %v2140
        %v2142 = vcombine.low %v667, %v689
        %v2143 = vcombine.high %v667, %v689
        %v2145 = vunpack.c.l.s4 1983009808
        %v2146 = vunpack.c.0.s8 %v2145
        %v2147 = vlaneseq
        %v2148 = vshrl.u32 %v2147, 7
        %v2149 = vsub.s32 %v2146, %v2148
        %v2150 = vrot.slane %v2142, %v2149
        %v2152 = vunpack.c.l.s4 1983009808
        %v2153 = vunpack.c.0.s8 %v2152
        %v2154 = vlaneseq
        %v2155 = vshrl.u32 %v2154, 7
        %v2156 = vsub.s32 %v2153, %v2155
        %v2157 = vrot.slane %v2143, %v2156
        %v2158 = vcombine.low %v2102, %v2118
        %v2159 = vcombine.high %v2102, %v2118
        %v2161 = vunpack.c.l.s4 1934713408
        %v2162 = vunpack.c.0.s8 %v2161
        %v2163 = vlaneseq
        %v2164 = vshrl.u32 %v2163, 7
        %v2165 = vsub.s32 %v2162, %v2164
        %v2166 = vrot.slane %v2158, %v2165
        %v2168 = vunpack.c.l.s4 1934713408
        %v2169 = vunpack.c.0.s8 %v2168
        %v2170 = vlaneseq
        %v2171 = vshrl.u32 %v2170, 7
        %v2172 = vsub.s32 %v2169, %v2171
        %v2173 = vrot.slane %v2159, %v2172
        %v2174 = vcombine.low %v2109, %v2125
        %v2175 = vcombine.high %v2109, %v2125
        %v2177 = vunpack.c.l.s4 1934713408
        %v2178 = vunpack.c.0.s8 %v2177
        %v2179 = vlaneseq
        %v2180 = vshrl.u32 %v2179, 7
        %v2181 = vsub.s32 %v2178, %v2180
        %v2182 = vrot.slane %v2174, %v2181
        %v2184 = vunpack.c.l.s4 1934713408
        %v2185 = vunpack.c.0.s8 %v2184
        %v2186 = vlaneseq
        %v2187 = vshrl.u32 %v2186, 7
        %v2188 = vsub.s32 %v2185, %v2187
        %v2189 = vrot.slane %v2175, %v2188
        %v2190 = vcombine.low %v2134, %v2150
        %v2191 = vcombine.high %v2134, %v2150
        %v2193 = vunpack.c.l.s4 1934713408
        %v2194 = vunpack.c.0.s8 %v2193
        %v2195 = vlaneseq
        %v2196 = vshrl.u32 %v2195, 7
        %v2197 = vsub.s32 %v2194, %v2196
        %v2198 = vrot.slane %v2190, %v2197
        %v2200 = vunpack.c.l.s4 1934713408
        %v2201 = vunpack.c.0.s8 %v2200
        %v2202 = vlaneseq
        %v2203 = vshrl.u32 %v2202, 7
        %v2204 = vsub.s32 %v2201, %v2203
        %v2205 = vrot.slane %v2191, %v2204
        %v2206 = vcombine.low %v2141, %v2157
        %v2207 = vcombine.high %v2141, %v2157
        %v2209 = vunpack.c.l.s4 1934713408
        %v2210 = vunpack.c.0.s8 %v2209
        %v2211 = vlaneseq
        %v2212 = vshrl.u32 %v2211, 7
        %v2213 = vsub.s32 %v2210, %v2212
        %v2214 = vrot.slane %v2206, %v2213
        %v2216 = vunpack.c.l.s4 1934713408
        %v2217 = vunpack.c.0.s8 %v2216
        %v2218 = vlaneseq
        %v2219 = vshrl.u32 %v2218, 7
        %v2220 = vsub.s32 %v2217, %v2219
        %v2221 = vrot.slane %v2207, %v2220
        %v2222 = vcombine.low %v2166, %v2198
        %v2223 = vcombine.high %v2166, %v2198
        %v2224 = vcombine.low %v2173, %v2205
        %v2225 = vcombine.high %v2173, %v2205
        %v2226 = vcombine.low %v2182, %v2214
        %v2227 = vcombine.high %v2182, %v2214
        %v2228 = vcombine.low %v2189, %v2221
        %v2229 = vcombine.high %v2189, %v2221
        %v2230 = vcombine.low %v528, %v550
        %v2231 = vcombine.high %v528, %v550
        %v2233 = vunpack.c.l.s4 1983009808
        %v2234 = vunpack.c.0.s8 %v2233
        %v2235 = vlaneseq
        %v2236 = vshrl.u32 %v2235, 7
        %v2237 = vsub.s32 %v2234, %v2236
        %v2238 = vrot.slane %v2230, %v2237
        %v2240 = vunpack.c.l.s4 1983009808
        %v2241 = vunpack.c.0.s8 %v2240
        %v2242 = vlaneseq
        %v2243 = vshrl.u32 %v2242, 7
        %v2244 = vsub.s32 %v2241, %v2243
        %v2245 = vrot.slane %v2231, %v2244
        %v2246 = vcombine.low %v539, %v561
        %v2247 = vcombine.high %v539, %v561
        %v2249 = vunpack.c.l.s4 1983009808
        %v2250 = vunpack.c.0.s8 %v2249
        %v2251 = vlaneseq
        %v2252 = vshrl.u32 %v2251, 7
        %v2253 = vsub.s32 %v2250, %v2252
        %v2254 = vrot.slane %v2246, %v2253
        %v2256 = vunpack.c.l.s4 1983009808
        %v2257 = vunpack.c.0.s8 %v2256
        %v2258 = vlaneseq
        %v2259 = vshrl.u32 %v2258, 7
        %v2260 = vsub.s32 %v2257, %v2259
        %v2261 = vrot.slane %v2247, %v2260
        %v2262 = vcombine.low %v572, %v594
        %v2263 = vcombine.high %v572, %v594
        %v2265 = vunpack.c.l.s4 1983009808
        %v2266 = vunpack.c.0.s8 %v2265
        %v2267 = vlaneseq
        %v2268 = vshrl.u32 %v2267, 7
        %v2269 = vsub.s32 %v2266, %v2268
        %v2270 = vrot.slane %v2262, %v2269
        %v2272 = vunpack.c.l.s4 1983009808
        %v2273 = vunpack.c.0.s8 %v2272
        %v2274 = vlaneseq
        %v2275 = vshrl.u32 %v2274, 7
        %v2276 = vsub.s32 %v2273, %v2275
        %v2277 = vrot.slane %v2263, %v2276
        %v2278 = vcombine.low %v583, %v605
        %v2279 = vcombine.high %v583, %v605
        %v2281 = vunpack.c.l.s4 1983009808
        %v2282 = vunpack.c.0.s8 %v2281
        %v2283 = vlaneseq
        %v2284 = vshrl.u32 %v2283, 7
        %v2285 = vsub.s32 %v2282, %v2284
        %v2286 = vrot.slane %v2278, %v2285
        %v2288 = vunpack.c.l.s4 1983009808
        %v2289 = vunpack.c.0.s8 %v2288
        %v2290 = vlaneseq
        %v2291 = vshrl.u32 %v2290, 7
        %v2292 = vsub.s32 %v2289, %v2291
        %v2293 = vrot.slane %v2279, %v2292
        %v2294 = vcombine.low %v2238, %v2254
        %v2295 = vcombine.high %v2238, %v2254
        %v2297 = vunpack.c.l.s4 1934713408
        %v2298 = vunpack.c.0.s8 %v2297
        %v2299 = vlaneseq
        %v2300 = vshrl.u32 %v2299, 7
        %v2301 = vsub.s32 %v2298, %v2300
        %v2302 = vrot.slane %v2294, %v2301
        %v2304 = vunpack.c.l.s4 1934713408
        %v2305 = vunpack.c.0.s8 %v2304
        %v2306 = vlaneseq
        %v2307 = vshrl.u32 %v2306, 7
        %v2308 = vsub.s32 %v2305, %v2307
        %v2309 = vrot.slane %v2295, %v2308
        %v2310 = vcombine.low %v2245, %v2261
        %v2311 = vcombine.high %v2245, %v2261
        %v2313 = vunpack.c.l.s4 1934713408
        %v2314 = vunpack.c.0.s8 %v2313
        %v2315 = vlaneseq
        %v2316 = vshrl.u32 %v2315, 7
        %v2317 = vsub.s32 %v2314, %v2316
        %v2318 = vrot.slane %v2310, %v2317
        %v2320 = vunpack.c.l.s4 1934713408
        %v2321 = vunpack.c.0.s8 %v2320
        %v2322 = vlaneseq
        %v2323 = vshrl.u32 %v2322, 7
        %v2324 = vsub.s32 %v2321, %v2323
        %v2325 = vrot.slane %v2311, %v2324
        %v2326 = vcombine.low %v2270, %v2286
        %v2327 = vcombine.high %v2270, %v2286
        %v2329 = vunpack.c.l.s4 1934713408
        %v2330 = vunpack.c.0.s8 %v2329
        %v2331 = vlaneseq
        %v2332 = vshrl.u32 %v2331, 7
        %v2333 = vsub.s32 %v2330, %v2332
        %v2334 = vrot.slane %v2326, %v2333
        %v2336 = vunpack.c.l.s4 1934713408
        %v2337 = vunpack.c.0.s8 %v2336
        %v2338 = vlaneseq
        %v2339 = vshrl.u32 %v2338, 7
        %v2340 = vsub.s32 %v2337, %v2339
        %v2341 = vrot.slane %v2327, %v2340
        %v2342 = vcombine.low %v2277, %v2293
        %v2343 = vcombine.high %v2277, %v2293
        %v2345 = vunpack.c.l.s4 1934713408
        %v2346 = vunpack.c.0.s8 %v2345
        %v2347 = vlaneseq
        %v2348 = vshrl.u32 %v2347, 7
        %v2349 = vsub.s32 %v2346, %v2348
        %v2350 = vrot.slane %v2342, %v2349
        %v2352 = vunpack.c.l.s4 1934713408
        %v2353 = vunpack.c.0.s8 %v2352
        %v2354 = vlaneseq
        %v2355 = vshrl.u32 %v2354, 7
        %v2356 = vsub.s32 %v2353, %v2355
        %v2357 = vrot.slane %v2343, %v2356
        %v2358 = vcombine.low %v2302, %v2334
        %v2359 = vcombine.high %v2302, %v2334
        %v2360 = vcombine.low %v2309, %v2341
        %v2361 = vcombine.high %v2309, %v2341
        %v2362 = vcombine.low %v2318, %v2350
        %v2363 = vcombine.high %v2318, %v2350
        %v2364 = vcombine.low %v2325, %v2357
        %v2365 = vcombine.high %v2325, %v2357
        %v2366 = vcombine.low %v616, %v638
        %v2367 = vcombine.high %v616, %v638
        %v2369 = vunpack.c.l.s4 1983009808
        %v2370 = vunpack.c.0.s8 %v2369
        %v2371 = vlaneseq
        %v2372 = vshrl.u32 %v2371, 7
        %v2373 = vsub.s32 %v2370, %v2372
        %v2374 = vrot.slane %v2366, %v2373
        %v2376 = vunpack.c.l.s4 1983009808
        %v2377 = vunpack.c.0.s8 %v2376
        %v2378 = vlaneseq
        %v2379 = vshrl.u32 %v2378, 7
        %v2380 = vsub.s32 %v2377, %v2379
        %v2381 = vrot.slane %v2367, %v2380
        %v2382 = vcombine.low %v627, %v649
        %v2383 = vcombine.high %v627, %v649
        %v2385 = vunpack.c.l.s4 1983009808
        %v2386 = vunpack.c.0.s8 %v2385
        %v2387 = vlaneseq
        %v2388 = vshrl.u32 %v2387, 7
        %v2389 = vsub.s32 %v2386, %v2388
        %v2390 = vrot.slane %v2382, %v2389
        %v2392 = vunpack.c.l.s4 1983009808
        %v2393 = vunpack.c.0.s8 %v2392
        %v2394 = vlaneseq
        %v2395 = vshrl.u32 %v2394, 7
        %v2396 = vsub.s32 %v2393, %v2395
        %v2397 = vrot.slane %v2383, %v2396
        %v2398 = vcombine.low %v660, %v682
        %v2399 = vcombine.high %v660, %v682
        %v2401 = vunpack.c.l.s4 1983009808
        %v2402 = vunpack.c.0.s8 %v2401
        %v2403 = vlaneseq
        %v2404 = vshrl.u32 %v2403, 7
        %v2405 = vsub.s32 %v2402, %v2404
        %v2406 = vrot.slane %v2398, %v2405
        %v2408 = vunpack.c.l.s4 1983009808
        %v2409 = vunpack.c.0.s8 %v2408
        %v2410 = vlaneseq
        %v2411 = vshrl.u32 %v2410, 7
        %v2412 = vsub.s32 %v2409, %v2411
        %v2413 = vrot.slane %v2399, %v2412
        %v2414 = vcombine.low %v671, %v693
        %v2415 = vcombine.high %v671, %v693
        %v2417 = vunpack.c.l.s4 1983009808
        %v2418 = vunpack.c.0.s8 %v2417
        %v2419 = vlaneseq
        %v2420 = vshrl.u32 %v2419, 7
        %v2421 = vsub.s32 %v2418, %v2420
        %v2422 = vrot.slane %v2414, %v2421
        %v2424 = vunpack.c.l.s4 1983009808
        %v2425 = vunpack.c.0.s8 %v2424
        %v2426 = vlaneseq
        %v2427 = vshrl.u32 %v2426, 7
        %v2428 = vsub.s32 %v2425, %v2427
        %v2429 = vrot.slane %v2415, %v2428
        %v2430 = vcombine.low %v2374, %v2390
        %v2431 = vcombine.high %v2374, %v2390
        %v2433 = vunpack.c.l.s4 1934713408
        %v2434 = vunpack.c.0.s8 %v2433
        %v2435 = vlaneseq
        %v2436 = vshrl.u32 %v2435, 7
        %v2437 = vsub.s32 %v2434, %v2436
        %v2438 = vrot.slane %v2430, %v2437
        %v2440 = vunpack.c.l.s4 1934713408
        %v2441 = vunpack.c.0.s8 %v2440
        %v2442 = vlaneseq
        %v2443 = vshrl.u32 %v2442, 7
        %v2444 = vsub.s32 %v2441, %v2443
        %v2445 = vrot.slane %v2431, %v2444
        %v2446 = vcombine.low %v2381, %v2397
        %v2447 = vcombine.high %v2381, %v2397
        %v2449 = vunpack.c.l.s4 1934713408
        %v2450 = vunpack.c.0.s8 %v2449
        %v2451 = vlaneseq
        %v2452 = vshrl.u32 %v2451, 7
        %v2453 = vsub.s32 %v2450, %v2452
        %v2454 = vrot.slane %v2446, %v2453
        %v2456 = vunpack.c.l.s4 1934713408
        %v2457 = vunpack.c.0.s8 %v2456
        %v2458 = vlaneseq
        %v2459 = vshrl.u32 %v2458, 7
        %v2460 = vsub.s32 %v2457, %v2459
        %v2461 = vrot.slane %v2447, %v2460
        %v2462 = vcombine.low %v2406, %v2422
        %v2463 = vcombine.high %v2406, %v2422
        %v2465 = vunpack.c.l.s4 1934713408
        %v2466 = vunpack.c.0.s8 %v2465
        %v2467 = vlaneseq
        %v2468 = vshrl.u32 %v2467, 7
        %v2469 = vsub.s32 %v2466, %v2468
        %v2470 = vrot.slane %v2462, %v2469
        %v2472 = vunpack.c.l.s4 1934713408
        %v2473 = vunpack.c.0.s8 %v2472
        %v2474 = vlaneseq
        %v2475 = vshrl.u32 %v2474, 7
        %v2476 = vsub.s32 %v2473, %v2475
        %v2477 = vrot.slane %v2463, %v2476
        %v2478 = vcombine.low %v2413, %v2429
        %v2479 = vcombine.high %v2413, %v2429
        %v2481 = vunpack.c.l.s4 1934713408
        %v2482 = vunpack.c.0.s8 %v2481
        %v2483 = vlaneseq
        %v2484 = vshrl.u32 %v2483, 7
        %v2485 = vsub.s32 %v2482, %v2484
        %v2486 = vrot.slane %v2478, %v2485
        %v2488 = vunpack.c.l.s4 1934713408
        %v2489 = vunpack.c.0.s8 %v2488
        %v2490 = vlaneseq
        %v2491 = vshrl.u32 %v2490, 7
        %v2492 = vsub.s32 %v2489, %v2491
        %v2493 = vrot.slane %v2479, %v2492
        %v2494 = vcombine.low %v2438, %v2470
        %v2495 = vcombine.high %v2438, %v2470
        %v2496 = vcombine.low %v2445, %v2477
        %v2497 = vcombine.high %v2445, %v2477
        %v2498 = vcombine.low %v2454, %v2486
        %v2499 = vcombine.high %v2454, %v2486
        %v2500 = vcombine.low %v2461, %v2493
        %v2501 = vcombine.high %v2461, %v2493
        %v2502 = vcombine.low %v700, %v722
        %v2503 = vcombine.high %v700, %v722
        %v2505 = vunpack.c.l.s4 1983009808
        %v2506 = vunpack.c.0.s8 %v2505
        %v2507 = vlaneseq
        %v2508 = vshrl.u32 %v2507, 7
        %v2509 = vsub.s32 %v2506, %v2508
        %v2510 = vrot.slane %v2502, %v2509
        %v2512 = vunpack.c.l.s4 1983009808
        %v2513 = vunpack.c.0.s8 %v2512
        %v2514 = vlaneseq
        %v2515 = vshrl.u32 %v2514, 7
        %v2516 = vsub.s32 %v2513, %v2515
        %v2517 = vrot.slane %v2503, %v2516
        %v2518 = vcombine.low %v711, %v733
        %v2519 = vcombine.high %v711, %v733
        %v2521 = vunpack.c.l.s4 1983009808
        %v2522 = vunpack.c.0.s8 %v2521
        %v2523 = vlaneseq
        %v2524 = vshrl.u32 %v2523, 7
        %v2525 = vsub.s32 %v2522, %v2524
        %v2526 = vrot.slane %v2518, %v2525
        %v2528 = vunpack.c.l.s4 1983009808
        %v2529 = vunpack.c.0.s8 %v2528
        %v2530 = vlaneseq
        %v2531 = vshrl.u32 %v2530, 7
        %v2532 = vsub.s32 %v2529, %v2531
        %v2533 = vrot.slane %v2519, %v2532
        %v2534 = vcombine.low %v744, %v766
        %v2535 = vcombine.high %v744, %v766
        %v2537 = vunpack.c.l.s4 1983009808
        %v2538 = vunpack.c.0.s8 %v2537
        %v2539 = vlaneseq
        %v2540 = vshrl.u32 %v2539, 7
        %v2541 = vsub.s32 %v2538, %v2540
        %v2542 = vrot.slane %v2534, %v2541
        %v2544 = vunpack.c.l.s4 1983009808
        %v2545 = vunpack.c.0.s8 %v2544
        %v2546 = vlaneseq
        %v2547 = vshrl.u32 %v2546, 7
        %v2548 = vsub.s32 %v2545, %v2547
        %v2549 = vrot.slane %v2535, %v2548
        %v2550 = vcombine.low %v755, %v777
        %v2551 = vcombine.high %v755, %v777
        %v2553 = vunpack.c.l.s4 1983009808
        %v2554 = vunpack.c.0.s8 %v2553
        %v2555 = vlaneseq
        %v2556 = vshrl.u32 %v2555, 7
        %v2557 = vsub.s32 %v2554, %v2556
        %v2558 = vrot.slane %v2550, %v2557
        %v2560 = vunpack.c.l.s4 1983009808
        %v2561 = vunpack.c.0.s8 %v2560
        %v2562 = vlaneseq
        %v2563 = vshrl.u32 %v2562, 7
        %v2564 = vsub.s32 %v2561, %v2563
        %v2565 = vrot.slane %v2551, %v2564
        %v2566 = vcombine.low %v2510, %v2526
        %v2567 = vcombine.high %v2510, %v2526
        %v2569 = vunpack.c.l.s4 1934713408
        %v2570 = vunpack.c.0.s8 %v2569
        %v2571 = vlaneseq
        %v2572 = vshrl.u32 %v2571, 7
        %v2573 = vsub.s32 %v2570, %v2572
        %v2574 = vrot.slane %v2566, %v2573
        %v2576 = vunpack.c.l.s4 1934713408
        %v2577 = vunpack.c.0.s8 %v2576
        %v2578 = vlaneseq
        %v2579 = vshrl.u32 %v2578, 7
        %v2580 = vsub.s32 %v2577, %v2579
        %v2581 = vrot.slane %v2567, %v2580
        %v2582 = vcombine.low %v2517, %v2533
        %v2583 = vcombine.high %v2517, %v2533
        %v2585 = vunpack.c.l.s4 1934713408
        %v2586 = vunpack.c.0.s8 %v2585
        %v2587 = vlaneseq
        %v2588 = vshrl.u32 %v2587, 7
        %v2589 = vsub.s32 %v2586, %v2588
        %v2590 = vrot.slane %v2582, %v2589
        %v2592 = vunpack.c.l.s4 1934713408
        %v2593 = vunpack.c.0.s8 %v2592
        %v2594 = vlaneseq
        %v2595 = vshrl.u32 %v2594, 7
        %v2596 = vsub.s32 %v2593, %v2595
        %v2597 = vrot.slane %v2583, %v2596
        %v2598 = vcombine.low %v2542, %v2558
        %v2599 = vcombine.high %v2542, %v2558
        %v2601 = vunpack.c.l.s4 1934713408
        %v2602 = vunpack.c.0.s8 %v2601
        %v2603 = vlaneseq
        %v2604 = vshrl.u32 %v2603, 7
        %v2605 = vsub.s32 %v2602, %v2604
        %v2606 = vrot.slane %v2598, %v2605
        %v2608 = vunpack.c.l.s4 1934713408
        %v2609 = vunpack.c.0.s8 %v2608
        %v2610 = vlaneseq
        %v2611 = vshrl.u32 %v2610, 7
        %v2612 = vsub.s32 %v2609, %v2611
        %v2613 = vrot.slane %v2599, %v2612
        %v2614 = vcombine.low %v2549, %v2565
        %v2615 = vcombine.high %v2549, %v2565
        %v2617 = vunpack.c.l.s4 1934713408
        %v2618 = vunpack.c.0.s8 %v2617
        %v2619 = vlaneseq
        %v2620 = vshrl.u32 %v2619, 7
        %v2621 = vsub.s32 %v2618, %v2620
        %v2622 = vrot.slane %v2614, %v2621
        %v2624 = vunpack.c.l.s4 1934713408
        %v2625 = vunpack.c.0.s8 %v2624
        %v2626 = vlaneseq
        %v2627 = vshrl.u32 %v2626, 7
        %v2628 = vsub.s32 %v2625, %v2627
        %v2629 = vrot.slane %v2615, %v2628
        %v2630 = vcombine.low %v2574, %v2606
        %v2631 = vcombine.high %v2574, %v2606
        %v2632 = vcombine.low %v2581, %v2613
        %v2633 = vcombine.high %v2581, %v2613
        %v2634 = vcombine.low %v2590, %v2622
        %v2635 = vcombine.high %v2590, %v2622
        %v2636 = vcombine.low %v2597, %v2629
        %v2637 = vcombine.high %v2597, %v2629
        %v2638 = vcombine.low %v788, %v810
        %v2639 = vcombine.high %v788, %v810
        %v2641 = vunpack.c.l.s4 1983009808
        %v2642 = vunpack.c.0.s8 %v2641
        %v2643 = vlaneseq
        %v2644 = vshrl.u32 %v2643, 7
        %v2645 = vsub.s32 %v2642, %v2644
        %v2646 = vrot.slane %v2638, %v2645
        %v2648 = vunpack.c.l.s4 1983009808
        %v2649 = vunpack.c.0.s8 %v2648
        %v2650 = vlaneseq
        %v2651 = vshrl.u32 %v2650, 7
        %v2652 = vsub.s32 %v2649, %v2651
        %v2653 = vrot.slane %v2639, %v2652
        %v2654 = vcombine.low %v799, %v821
        %v2655 = vcombine.high %v799, %v821
        %v2657 = vunpack.c.l.s4 1983009808
        %v2658 = vunpack.c.0.s8 %v2657
        %v2659 = vlaneseq
        %v2660 = vshrl.u32 %v2659, 7
        %v2661 = vsub.s32 %v2658, %v2660
        %v2662 = vrot.slane %v2654, %v2661
        %v2664 = vunpack.c.l.s4 1983009808
        %v2665 = vunpack.c.0.s8 %v2664
        %v2666 = vlaneseq
        %v2667 = vshrl.u32 %v2666, 7
        %v2668 = vsub.s32 %v2665, %v2667
        %v2669 = vrot.slane %v2655, %v2668
        %v2670 = vcombine.low %v832, %v854
        %v2671 = vcombine.high %v832, %v854
        %v2673 = vunpack.c.l.s4 1983009808
        %v2674 = vunpack.c.0.s8 %v2673
        %v2675 = vlaneseq
        %v2676 = vshrl.u32 %v2675, 7
        %v2677 = vsub.s32 %v2674, %v2676
        %v2678 = vrot.slane %v2670, %v2677
        %v2680 = vunpack.c.l.s4 1983009808
        %v2681 = vunpack.c.0.s8 %v2680
        %v2682 = vlaneseq
        %v2683 = vshrl.u32 %v2682, 7
        %v2684 = vsub.s32 %v2681, %v2683
        %v2685 = vrot.slane %v2671, %v2684
        %v2686 = vcombine.low %v843, %v865
        %v2687 = vcombine.high %v843, %v865
        %v2689 = vunpack.c.l.s4 1983009808
        %v2690 = vunpack.c.0.s8 %v2689
        %v2691 = vlaneseq
        %v2692 = vshrl.u32 %v2691, 7
        %v2693 = vsub.s32 %v2690, %v2692
        %v2694 = vrot.slane %v2686, %v2693
        %v2696 = vunpack.c.l.s4 1983009808
        %v2697 = vunpack.c.0.s8 %v2696
        %v2698 = vlaneseq
        %v2699 = vshrl.u32 %v2698, 7
        %v2700 = vsub.s32 %v2697, %v2699
        %v2701 = vrot.slane %v2687, %v2700
        %v2702 = vcombine.low %v2646, %v2662
        %v2703 = vcombine.high %v2646, %v2662
        %v2705 = vunpack.c.l.s4 1934713408
        %v2706 = vunpack.c.0.s8 %v2705
        %v2707 = vlaneseq
        %v2708 = vshrl.u32 %v2707, 7
        %v2709 = vsub.s32 %v2706, %v2708
        %v2710 = vrot.slane %v2702, %v2709
        %v2712 = vunpack.c.l.s4 1934713408
        %v2713 = vunpack.c.0.s8 %v2712
        %v2714 = vlaneseq
        %v2715 = vshrl.u32 %v2714, 7
        %v2716 = vsub.s32 %v2713, %v2715
        %v2717 = vrot.slane %v2703, %v2716
        %v2718 = vcombine.low %v2653, %v2669
        %v2719 = vcombine.high %v2653, %v2669
        %v2721 = vunpack.c.l.s4 1934713408
        %v2722 = vunpack.c.0.s8 %v2721
        %v2723 = vlaneseq
        %v2724 = vshrl.u32 %v2723, 7
        %v2725 = vsub.s32 %v2722, %v2724
        %v2726 = vrot.slane %v2718, %v2725
        %v2728 = vunpack.c.l.s4 1934713408
        %v2729 = vunpack.c.0.s8 %v2728
        %v2730 = vlaneseq
        %v2731 = vshrl.u32 %v2730, 7
        %v2732 = vsub.s32 %v2729, %v2731
        %v2733 = vrot.slane %v2719, %v2732
        %v2734 = vcombine.low %v2678, %v2694
        %v2735 = vcombine.high %v2678, %v2694
        %v2737 = vunpack.c.l.s4 1934713408
        %v2738 = vunpack.c.0.s8 %v2737
        %v2739 = vlaneseq
        %v2740 = vshrl.u32 %v2739, 7
        %v2741 = vsub.s32 %v2738, %v2740
        %v2742 = vrot.slane %v2734, %v2741
        %v2744 = vunpack.c.l.s4 1934713408
        %v2745 = vunpack.c.0.s8 %v2744
        %v2746 = vlaneseq
        %v2747 = vshrl.u32 %v2746, 7
        %v2748 = vsub.s32 %v2745, %v2747
        %v2749 = vrot.slane %v2735, %v2748
        %v2750 = vcombine.low %v2685, %v2701
        %v2751 = vcombine.high %v2685, %v2701
        %v2753 = vunpack.c.l.s4 1934713408
        %v2754 = vunpack.c.0.s8 %v2753
        %v2755 = vlaneseq
        %v2756 = vshrl.u32 %v2755, 7
        %v2757 = vsub.s32 %v2754, %v2756
        %v2758 = vrot.slane %v2750, %v2757
        %v2760 = vunpack.c.l.s4 1934713408
        %v2761 = vunpack.c.0.s8 %v2760
        %v2762 = vlaneseq
        %v2763 = vshrl.u32 %v2762, 7
        %v2764 = vsub.s32 %v2761, %v2763
        %v2765 = vrot.slane %v2751, %v2764
        %v2766 = vcombine.low %v2710, %v2742
        %v2767 = vcombine.high %v2710, %v2742
        %v2768 = vcombine.low %v2717, %v2749
        %v2769 = vcombine.high %v2717, %v2749
        %v2770 = vcombine.low %v2726, %v2758
        %v2771 = vcombine.high %v2726, %v2758
        %v2772 = vcombine.low %v2733, %v2765
        %v2773 = vcombine.high %v2733, %v2765
        %v2774 = vcombine.low %v704, %v726
        %v2775 = vcombine.high %v704, %v726
        %v2777 = vunpack.c.l.s4 1983009808
        %v2778 = vunpack.c.0.s8 %v2777
        %v2779 = vlaneseq
        %v2780 = vshrl.u32 %v2779, 7
        %v2781 = vsub.s32 %v2778, %v2780
        %v2782 = vrot.slane %v2774, %v2781
        %v2784 = vunpack.c.l.s4 1983009808
        %v2785 = vunpack.c.0.s8 %v2784
        %v2786 = vlaneseq
        %v2787 = vshrl.u32 %v2786, 7
        %v2788 = vsub.s32 %v2785, %v2787
        %v2789 = vrot.slane %v2775, %v2788
        %v2790 = vcombine.low %v715, %v737
        %v2791 = vcombine.high %v715, %v737
        %v2793 = vunpack.c.l.s4 1983009808
        %v2794 = vunpack.c.0.s8 %v2793
        %v2795 = vlaneseq
        %v2796 = vshrl.u32 %v2795, 7
        %v2797 = vsub.s32 %v2794, %v2796
        %v2798 = vrot.slane %v2790, %v2797
        %v2800 = vunpack.c.l.s4 1983009808
        %v2801 = vunpack.c.0.s8 %v2800
        %v2802 = vlaneseq
        %v2803 = vshrl.u32 %v2802, 7
        %v2804 = vsub.s32 %v2801, %v2803
        %v2805 = vrot.slane %v2791, %v2804
        %v2806 = vcombine.low %v748, %v770
        %v2807 = vcombine.high %v748, %v770
        %v2809 = vunpack.c.l.s4 1983009808
        %v2810 = vunpack.c.0.s8 %v2809
        %v2811 = vlaneseq
        %v2812 = vshrl.u32 %v2811, 7
        %v2813 = vsub.s32 %v2810, %v2812
        %v2814 = vrot.slane %v2806, %v2813
        %v2816 = vunpack.c.l.s4 1983009808
        %v2817 = vunpack.c.0.s8 %v2816
        %v2818 = vlaneseq
        %v2819 = vshrl.u32 %v2818, 7
        %v2820 = vsub.s32 %v2817, %v2819
        %v2821 = vrot.slane %v2807, %v2820
        %v2822 = vcombine.low %v759, %v781
        %v2823 = vcombine.high %v759, %v781
        %v2825 = vunpack.c.l.s4 1983009808
        %v2826 = vunpack.c.0.s8 %v2825
        %v2827 = vlaneseq
        %v2828 = vshrl.u32 %v2827, 7
        %v2829 = vsub.s32 %v2826, %v2828
        %v2830 = vrot.slane %v2822, %v2829
        %v2832 = vunpack.c.l.s4 1983009808
        %v2833 = vunpack.c.0.s8 %v2832
        %v2834 = vlaneseq
        %v2835 = vshrl.u32 %v2834, 7
        %v2836 = vsub.s32 %v2833, %v2835
        %v2837 = vrot.slane %v2823, %v2836
        %v2838 = vcombine.low %v2782, %v2798
        %v2839 = vcombine.high %v2782, %v2798
        %v2841 = vunpack.c.l.s4 1934713408
        %v2842 = vunpack.c.0.s8 %v2841
        %v2843 = vlaneseq
        %v2844 = vshrl.u32 %v2843, 7
        %v2845 = vsub.s32 %v2842, %v2844
        %v2846 = vrot.slane %v2838, %v2845
        %v2848 = vunpack.c.l.s4 1934713408
        %v2849 = vunpack.c.0.s8 %v2848
        %v2850 = vlaneseq
        %v2851 = vshrl.u32 %v2850, 7
        %v2852 = vsub.s32 %v2849, %v2851
        %v2853 = vrot.slane %v2839, %v2852
        %v2854 = vcombine.low %v2789, %v2805
        %v2855 = vcombine.high %v2789, %v2805
        %v2857 = vunpack.c.l.s4 1934713408
        %v2858 = vunpack.c.0.s8 %v2857
        %v2859 = vlaneseq
        %v2860 = vshrl.u32 %v2859, 7
        %v2861 = vsub.s32 %v2858, %v2860
        %v2862 = vrot.slane %v2854, %v2861
        %v2864 = vunpack.c.l.s4 1934713408
        %v2865 = vunpack.c.0.s8 %v2864
        %v2866 = vlaneseq
        %v2867 = vshrl.u32 %v2866, 7
        %v2868 = vsub.s32 %v2865, %v2867
        %v2869 = vrot.slane %v2855, %v2868
        %v2870 = vcombine.low %v2814, %v2830
        %v2871 = vcombine.high %v2814, %v2830
        %v2873 = vunpack.c.l.s4 1934713408
        %v2874 = vunpack.c.0.s8 %v2873
        %v2875 = vlaneseq
        %v2876 = vshrl.u32 %v2875, 7
        %v2877 = vsub.s32 %v2874, %v2876
        %v2878 = vrot.slane %v2870, %v2877
        %v2880 = vunpack.c.l.s4 1934713408
        %v2881 = vunpack.c.0.s8 %v2880
        %v2882 = vlaneseq
        %v2883 = vshrl.u32 %v2882, 7
        %v2884 = vsub.s32 %v2881, %v2883
        %v2885 = vrot.slane %v2871, %v2884
        %v2886 = vcombine.low %v2821, %v2837
        %v2887 = vcombine.high %v2821, %v2837
        %v2889 = vunpack.c.l.s4 1934713408
        %v2890 = vunpack.c.0.s8 %v2889
        %v2891 = vlaneseq
        %v2892 = vshrl.u32 %v2891, 7
        %v2893 = vsub.s32 %v2890, %v2892
        %v2894 = vrot.slane %v2886, %v2893
        %v2896 = vunpack.c.l.s4 1934713408
        %v2897 = vunpack.c.0.s8 %v2896
        %v2898 = vlaneseq
        %v2899 = vshrl.u32 %v2898, 7
        %v2900 = vsub.s32 %v2897, %v2899
        %v2901 = vrot.slane %v2887, %v2900
        %v2902 = vcombine.low %v2846, %v2878
        %v2903 = vcombine.high %v2846, %v2878
        %v2904 = vcombine.low %v2853, %v2885
        %v2905 = vcombine.high %v2853, %v2885
        %v2906 = vcombine.low %v2862, %v2894
        %v2907 = vcombine.high %v2862, %v2894
        %v2908 = vcombine.low %v2869, %v2901
        %v2909 = vcombine.high %v2869, %v2901
        %v2910 = vcombine.low %v792, %v814
        %v2911 = vcombine.high %v792, %v814
        %v2913 = vunpack.c.l.s4 1983009808
        %v2914 = vunpack.c.0.s8 %v2913
        %v2915 = vlaneseq
        %v2916 = vshrl.u32 %v2915, 7
        %v2917 = vsub.s32 %v2914, %v2916
        %v2918 = vrot.slane %v2910, %v2917
        %v2920 = vunpack.c.l.s4 1983009808
        %v2921 = vunpack.c.0.s8 %v2920
        %v2922 = vlaneseq
        %v2923 = vshrl.u32 %v2922, 7
        %v2924 = vsub.s32 %v2921, %v2923
        %v2925 = vrot.slane %v2911, %v2924
        %v2926 = vcombine.low %v803, %v825
        %v2927 = vcombine.high %v803, %v825
        %v2929 = vunpack.c.l.s4 1983009808
        %v2930 = vunpack.c.0.s8 %v2929
        %v2931 = vlaneseq
        %v2932 = vshrl.u32 %v2931, 7
        %v2933 = vsub.s32 %v2930, %v2932
        %v2934 = vrot.slane %v2926, %v2933
        %v2936 = vunpack.c.l.s4 1983009808
        %v2937 = vunpack.c.0.s8 %v2936
        %v2938 = vlaneseq
        %v2939 = vshrl.u32 %v2938, 7
        %v2940 = vsub.s32 %v2937, %v2939
        %v2941 = vrot.slane %v2927, %v2940
        %v2942 = vcombine.low %v836, %v858
        %v2943 = vcombine.high %v836, %v858
        %v2945 = vunpack.c.l.s4 1983009808
        %v2946 = vunpack.c.0.s8 %v2945
        %v2947 = vlaneseq
        %v2948 = vshrl.u32 %v2947, 7
        %v2949 = vsub.s32 %v2946, %v2948
        %v2950 = vrot.slane %v2942, %v2949
        %v2952 = vunpack.c.l.s4 1983009808
        %v2953 = vunpack.c.0.s8 %v2952
        %v2954 = vlaneseq
        %v2955 = vshrl.u32 %v2954, 7
        %v2956 = vsub.s32 %v2953, %v2955
        %v2957 = vrot.slane %v2943, %v2956
        %v2958 = vcombine.low %v847, %v869
        %v2959 = vcombine.high %v847, %v869
        %v2961 = vunpack.c.l.s4 1983009808
        %v2962 = vunpack.c.0.s8 %v2961
        %v2963 = vlaneseq
        %v2964 = vshrl.u32 %v2963, 7
        %v2965 = vsub.s32 %v2962, %v2964
        %v2966 = vrot.slane %v2958, %v2965
        %v2968 = vunpack.c.l.s4 1983009808
        %v2969 = vunpack.c.0.s8 %v2968
        %v2970 = vlaneseq
        %v2971 = vshrl.u32 %v2970, 7
        %v2972 = vsub.s32 %v2969, %v2971
        %v2973 = vrot.slane %v2959, %v2972
        %v2974 = vcombine.low %v2918, %v2934
        %v2975 = vcombine.high %v2918, %v2934
        %v2977 = vunpack.c.l.s4 1934713408
        %v2978 = vunpack.c.0.s8 %v2977
        %v2979 = vlaneseq
        %v2980 = vshrl.u32 %v2979, 7
        %v2981 = vsub.s32 %v2978, %v2980
        %v2982 = vrot.slane %v2974, %v2981
        %v2984 = vunpack.c.l.s4 1934713408
        %v2985 = vunpack.c.0.s8 %v2984
        %v2986 = vlaneseq
        %v2987 = vshrl.u32 %v2986, 7
        %v2988 = vsub.s32 %v2985, %v2987
        %v2989 = vrot.slane %v2975, %v2988
        %v2990 = vcombine.low %v2925, %v2941
        %v2991 = vcombine.high %v2925, %v2941
        %v2993 = vunpack.c.l.s4 1934713408
        %v2994 = vunpack.c.0.s8 %v2993
        %v2995 = vlaneseq
        %v2996 = vshrl.u32 %v2995, 7
        %v2997 = vsub.s32 %v2994, %v2996
        %v2998 = vrot.slane %v2990, %v2997
        %v3000 = vunpack.c.l.s4 1934713408
        %v3001 = vunpack.c.0.s8 %v3000
        %v3002 = vlaneseq
        %v3003 = vshrl.u32 %v3002, 7
        %v3004 = vsub.s32 %v3001, %v3003
        %v3005 = vrot.slane %v2991, %v3004
        %v3006 = vcombine.low %v2950, %v2966
        %v3007 = vcombine.high %v2950, %v2966
        %v3009 = vunpack.c.l.s4 1934713408
        %v3010 = vunpack.c.0.s8 %v3009
        %v3011 = vlaneseq
        %v3012 = vshrl.u32 %v3011, 7
        %v3013 = vsub.s32 %v3010, %v3012
        %v3014 = vrot.slane %v3006, %v3013
        %v3016 = vunpack.c.l.s4 1934713408
        %v3017 = vunpack.c.0.s8 %v3016
        %v3018 = vlaneseq
        %v3019 = vshrl.u32 %v3018, 7
        %v3020 = vsub.s32 %v3017, %v3019
        %v3021 = vrot.slane %v3007, %v3020
        %v3022 = vcombine.low %v2957, %v2973
        %v3023 = vcombine.high %v2957, %v2973
        %v3025 = vunpack.c.l.s4 1934713408
        %v3026 = vunpack.c.0.s8 %v3025
        %v3027 = vlaneseq
        %v3028 = vshrl.u32 %v3027, 7
        %v3029 = vsub.s32 %v3026, %v3028
        %v3030 = vrot.slane %v3022, %v3029
        %v3032 = vunpack.c.l.s4 1934713408
        %v3033 = vunpack.c.0.s8 %v3032
        %v3034 = vlaneseq
        %v3035 = vshrl.u32 %v3034, 7
        %v3036 = vsub.s32 %v3033, %v3035
        %v3037 = vrot.slane %v3023, %v3036
        %v3038 = vcombine.low %v2982, %v3014
        %v3039 = vcombine.high %v2982, %v3014
        %v3040 = vcombine.low %v2989, %v3021
        %v3041 = vcombine.high %v2989, %v3021
        %v3042 = vcombine.low %v2998, %v3030
        %v3043 = vcombine.high %v2998, %v3030
        %v3044 = vcombine.low %v3005, %v3037
        %v3045 = vcombine.high %v3005, %v3037
        %3054 = vrot.lane.b32.xlu0 %v999, 2
        %v3055 = vpop.permute.xlu0 %3054
        %3056 = vrot.lane.b32.xlu0 %v1135, 2
        %v3057 = vpop.permute.xlu0 %3056
        %3058 = vrot.lane.b32.xlu0 %v1543, 2
        %v3059 = vpop.permute.xlu0 %3058
        %3060 = vrot.lane.b32.xlu0 %v1679, 2
        %v3061 = vpop.permute.xlu0 %3060
        %3062 = vrot.lane.b32.xlu0 %v2087, 2
        %v3063 = vpop.permute.xlu0 %3062
        %3064 = vrot.lane.b32.xlu0 %v2223, 2
        %v3065 = vpop.permute.xlu0 %3064
        %3066 = vrot.lane.b32.xlu0 %v2631, 2
        %v3067 = vpop.permute.xlu0 %3066
        %3068 = vrot.lane.b32.xlu0 %v2767, 2
        %v3069 = vpop.permute.xlu0 %3068
        %3086 = vrot.lane.b32.xlu0 %v1000, 4
        %v3087 = vpop.permute.xlu0 %3086
        %3088 = vrot.lane.b32.xlu0 %v1136, 4
        %v3089 = vpop.permute.xlu0 %3088
        %3090 = vrot.lane.b32.xlu0 %v1544, 4
        %v3091 = vpop.permute.xlu0 %3090
        %3092 = vrot.lane.b32.xlu0 %v1680, 4
        %v3093 = vpop.permute.xlu0 %3092
        %3094 = vrot.lane.b32.xlu0 %v2088, 4
        %v3095 = vpop.permute.xlu0 %3094
        %3096 = vrot.lane.b32.xlu0 %v2224, 4
        %v3097 = vpop.permute.xlu0 %3096
        %3098 = vrot.lane.b32.xlu0 %v2632, 4
        %v3099 = vpop.permute.xlu0 %3098
        %3100 = vrot.lane.b32.xlu0 %v2768, 4
        %v3101 = vpop.permute.xlu0 %3100
        %3118 = vrot.lane.b32.xlu0 %v1001, 6
        %v3119 = vpop.permute.xlu0 %3118
        %3120 = vrot.lane.b32.xlu0 %v1137, 6
        %v3121 = vpop.permute.xlu0 %3120
        %3122 = vrot.lane.b32.xlu0 %v1545, 6
        %v3123 = vpop.permute.xlu0 %3122
        %3124 = vrot.lane.b32.xlu0 %v1681, 6
        %v3125 = vpop.permute.xlu0 %3124
        %3126 = vrot.lane.b32.xlu0 %v2089, 6
        %v3127 = vpop.permute.xlu0 %3126
        %3128 = vrot.lane.b32.xlu0 %v2225, 6
        %v3129 = vpop.permute.xlu0 %3128
        %3130 = vrot.lane.b32.xlu0 %v2633, 6
        %v3131 = vpop.permute.xlu0 %3130
        %3132 = vrot.lane.b32.xlu0 %v2769, 6
        %v3133 = vpop.permute.xlu0 %3132
        %3150 = vrot.lane.b32.xlu0 %v1002, 8
        %v3151 = vpop.permute.xlu0 %3150
        %3152 = vrot.lane.b32.xlu0 %v1138, 8
        %v3153 = vpop.permute.xlu0 %3152
        %3154 = vrot.lane.b32.xlu0 %v1546, 8
        %v3155 = vpop.permute.xlu0 %3154
        %3156 = vrot.lane.b32.xlu0 %v1682, 8
        %v3157 = vpop.permute.xlu0 %3156
        %3158 = vrot.lane.b32.xlu0 %v2090, 8
        %v3159 = vpop.permute.xlu0 %3158
        %3160 = vrot.lane.b32.xlu0 %v2226, 8
        %v3161 = vpop.permute.xlu0 %3160
        %3162 = vrot.lane.b32.xlu0 %v2634, 8
        %v3163 = vpop.permute.xlu0 %3162
        %3164 = vrot.lane.b32.xlu0 %v2770, 8
        %v3165 = vpop.permute.xlu0 %3164
        %3182 = vrot.lane.b32.xlu0 %v1003, 10
        %v3183 = vpop.permute.xlu0 %3182
        %3184 = vrot.lane.b32.xlu0 %v1139, 10
        %v3185 = vpop.permute.xlu0 %3184
        %3186 = vrot.lane.b32.xlu0 %v1547, 10
        %v3187 = vpop.permute.xlu0 %3186
        %3188 = vrot.lane.b32.xlu0 %v1683, 10
        %v3189 = vpop.permute.xlu0 %3188
        %3190 = vrot.lane.b32.xlu0 %v2091, 10
        %v3191 = vpop.permute.xlu0 %3190
        %3192 = vrot.lane.b32.xlu0 %v2227, 10
        %v3193 = vpop.permute.xlu0 %3192
        %3194 = vrot.lane.b32.xlu0 %v2635, 10
        %v3195 = vpop.permute.xlu0 %3194
        %3196 = vrot.lane.b32.xlu0 %v2771, 10
        %v3197 = vpop.permute.xlu0 %3196
        %3214 = vrot.lane.b32.xlu0 %v1004, 12
        %v3215 = vpop.permute.xlu0 %3214
        %3216 = vrot.lane.b32.xlu0 %v1140, 12
        %v3217 = vpop.permute.xlu0 %3216
        %3218 = vrot.lane.b32.xlu0 %v1548, 12
        %v3219 = vpop.permute.xlu0 %3218
        %3220 = vrot.lane.b32.xlu0 %v1684, 12
        %v3221 = vpop.permute.xlu0 %3220
        %3222 = vrot.lane.b32.xlu0 %v2092, 12
        %v3223 = vpop.permute.xlu0 %3222
        %3224 = vrot.lane.b32.xlu0 %v2228, 12
        %v3225 = vpop.permute.xlu0 %3224
        %3226 = vrot.lane.b32.xlu0 %v2636, 12
        %v3227 = vpop.permute.xlu0 %3226
        %3228 = vrot.lane.b32.xlu0 %v2772, 12
        %v3229 = vpop.permute.xlu0 %3228
        %3246 = vrot.lane.b32.xlu0 %v1005, 14
        %v3247 = vpop.permute.xlu0 %3246
        %3248 = vrot.lane.b32.xlu0 %v1141, 14
        %v3249 = vpop.permute.xlu0 %3248
        %3250 = vrot.lane.b32.xlu0 %v1549, 14
        %v3251 = vpop.permute.xlu0 %3250
        %3252 = vrot.lane.b32.xlu0 %v1685, 14
        %v3253 = vpop.permute.xlu0 %3252
        %3254 = vrot.lane.b32.xlu0 %v2093, 14
        %v3255 = vpop.permute.xlu0 %3254
        %3256 = vrot.lane.b32.xlu0 %v2229, 14
        %v3257 = vpop.permute.xlu0 %3256
        %3258 = vrot.lane.b32.xlu0 %v2637, 14
        %v3259 = vpop.permute.xlu0 %3258
        %3260 = vrot.lane.b32.xlu0 %v2773, 14
        %v3261 = vpop.permute.xlu0 %3260
        %3278 = vrot.lane.b32.xlu0 %v1270, 16
        %v3279 = vpop.permute.xlu0 %3278
        %3280 = vrot.lane.b32.xlu0 %v1406, 16
        %v3281 = vpop.permute.xlu0 %3280
        %3282 = vrot.lane.b32.xlu0 %v1814, 16
        %v3283 = vpop.permute.xlu0 %3282
        %3284 = vrot.lane.b32.xlu0 %v1950, 16
        %v3285 = vpop.permute.xlu0 %3284
        %3286 = vrot.lane.b32.xlu0 %v2358, 16
        %v3287 = vpop.permute.xlu0 %3286
        %3288 = vrot.lane.b32.xlu0 %v2494, 16
        %v3289 = vpop.permute.xlu0 %3288
        %3290 = vrot.lane.b32.xlu0 %v2902, 16
        %v3291 = vpop.permute.xlu0 %3290
        %3292 = vrot.lane.b32.xlu0 %v3038, 16
        %v3293 = vpop.permute.xlu0 %3292
        %3310 = vrot.lane.b32.xlu0 %v1271, 18
        %v3311 = vpop.permute.xlu0 %3310
        %3312 = vrot.lane.b32.xlu0 %v1407, 18
        %v3313 = vpop.permute.xlu0 %3312
        %3314 = vrot.lane.b32.xlu0 %v1815, 18
        %v3315 = vpop.permute.xlu0 %3314
        %3316 = vrot.lane.b32.xlu0 %v1951, 18
        %v3317 = vpop.permute.xlu0 %3316
        %3318 = vrot.lane.b32.xlu0 %v2359, 18
        %v3319 = vpop.permute.xlu0 %3318
        %3320 = vrot.lane.b32.xlu0 %v2495, 18
        %v3321 = vpop.permute.xlu0 %3320
        %3322 = vrot.lane.b32.xlu0 %v2903, 18
        %v3323 = vpop.permute.xlu0 %3322
        %3324 = vrot.lane.b32.xlu0 %v3039, 18
        %v3325 = vpop.permute.xlu0 %3324
        %3342 = vrot.lane.b32.xlu0 %v1272, 20
        %v3343 = vpop.permute.xlu0 %3342
        %3344 = vrot.lane.b32.xlu0 %v1408, 20
        %v3345 = vpop.permute.xlu0 %3344
        %3346 = vrot.lane.b32.xlu0 %v1816, 20
        %v3347 = vpop.permute.xlu0 %3346
        %3348 = vrot.lane.b32.xlu0 %v1952, 20
        %v3349 = vpop.permute.xlu0 %3348
        %3350 = vrot.lane.b32.xlu0 %v2360, 20
        %v3351 = vpop.permute.xlu0 %3350
        %3352 = vrot.lane.b32.xlu0 %v2496, 20
        %v3353 = vpop.permute.xlu0 %3352
        %3354 = vrot.lane.b32.xlu0 %v2904, 20
        %v3355 = vpop.permute.xlu0 %3354
        %3356 = vrot.lane.b32.xlu0 %v3040, 20
        %v3357 = vpop.permute.xlu0 %3356
        %3374 = vrot.lane.b32.xlu0 %v1273, 22
        %v3375 = vpop.permute.xlu0 %3374
        %3376 = vrot.lane.b32.xlu0 %v1409, 22
        %v3377 = vpop.permute.xlu0 %3376
        %3378 = vrot.lane.b32.xlu0 %v1817, 22
        %v3379 = vpop.permute.xlu0 %3378
        %3380 = vrot.lane.b32.xlu0 %v1953, 22
        %v3381 = vpop.permute.xlu0 %3380
        %3382 = vrot.lane.b32.xlu0 %v2361, 22
        %v3383 = vpop.permute.xlu0 %3382
        %3384 = vrot.lane.b32.xlu0 %v2497, 22
        %v3385 = vpop.permute.xlu0 %3384
        %3386 = vrot.lane.b32.xlu0 %v2905, 22
        %v3387 = vpop.permute.xlu0 %3386
        %3388 = vrot.lane.b32.xlu0 %v3041, 22
        %v3389 = vpop.permute.xlu0 %3388
        %3406 = vrot.lane.b32.xlu0 %v1274, 24
        %v3407 = vpop.permute.xlu0 %3406
        %3408 = vrot.lane.b32.xlu0 %v1410, 24
        %v3409 = vpop.permute.xlu0 %3408
        %3410 = vrot.lane.b32.xlu0 %v1818, 24
        %v3411 = vpop.permute.xlu0 %3410
        %3412 = vrot.lane.b32.xlu0 %v1954, 24
        %v3413 = vpop.permute.xlu0 %3412
        %3414 = vrot.lane.b32.xlu0 %v2362, 24
        %v3415 = vpop.permute.xlu0 %3414
        %3416 = vrot.lane.b32.xlu0 %v2498, 24
        %v3417 = vpop.permute.xlu0 %3416
        %3418 = vrot.lane.b32.xlu0 %v2906, 24
        %v3419 = vpop.permute.xlu0 %3418
        %3420 = vrot.lane.b32.xlu0 %v3042, 24
        %v3421 = vpop.permute.xlu0 %3420
        %3438 = vrot.lane.b32.xlu0 %v1275, 26
        %v3439 = vpop.permute.xlu0 %3438
        %3440 = vrot.lane.b32.xlu0 %v1411, 26
        %v3441 = vpop.permute.xlu0 %3440
        %3442 = vrot.lane.b32.xlu0 %v1819, 26
        %v3443 = vpop.permute.xlu0 %3442
        %3444 = vrot.lane.b32.xlu0 %v1955, 26
        %v3445 = vpop.permute.xlu0 %3444
        %3446 = vrot.lane.b32.xlu0 %v2363, 26
        %v3447 = vpop.permute.xlu0 %3446
        %3448 = vrot.lane.b32.xlu0 %v2499, 26
        %v3449 = vpop.permute.xlu0 %3448
        %3450 = vrot.lane.b32.xlu0 %v2907, 26
        %v3451 = vpop.permute.xlu0 %3450
        %3452 = vrot.lane.b32.xlu0 %v3043, 26
        %v3453 = vpop.permute.xlu0 %3452
        %3470 = vrot.lane.b32.xlu0 %v1276, 28
        %v3471 = vpop.permute.xlu0 %3470
        %3472 = vrot.lane.b32.xlu0 %v1412, 28
        %v3473 = vpop.permute.xlu0 %3472
        %3474 = vrot.lane.b32.xlu0 %v1820, 28
        %v3475 = vpop.permute.xlu0 %3474
        %3476 = vrot.lane.b32.xlu0 %v1956, 28
        %v3477 = vpop.permute.xlu0 %3476
        %3478 = vrot.lane.b32.xlu0 %v2364, 28
        %v3479 = vpop.permute.xlu0 %3478
        %3480 = vrot.lane.b32.xlu0 %v2500, 28
        %v3481 = vpop.permute.xlu0 %3480
        %3482 = vrot.lane.b32.xlu0 %v2908, 28
        %v3483 = vpop.permute.xlu0 %3482
        %3484 = vrot.lane.b32.xlu0 %v3044, 28
        %v3485 = vpop.permute.xlu0 %3484
        %3502 = vrot.lane.b32.xlu0 %v1277, 30
        %v3503 = vpop.permute.xlu0 %3502
        %3504 = vrot.lane.b32.xlu0 %v1413, 30
        %v3505 = vpop.permute.xlu0 %3504
        %3506 = vrot.lane.b32.xlu0 %v1821, 30
        %v3507 = vpop.permute.xlu0 %3506
        %3508 = vrot.lane.b32.xlu0 %v1957, 30
        %v3509 = vpop.permute.xlu0 %3508
        %3510 = vrot.lane.b32.xlu0 %v2365, 30
        %v3511 = vpop.permute.xlu0 %3510
        %3512 = vrot.lane.b32.xlu0 %v2501, 30
        %v3513 = vpop.permute.xlu0 %3512
        %3514 = vrot.lane.b32.xlu0 %v2909, 30
        %v3515 = vpop.permute.xlu0 %3514
        %3516 = vrot.lane.b32.xlu0 %v3045, 30
        %v3517 = vpop.permute.xlu0 %3516
        %vm3526 = vcmask 15360
        %v3527 = vsel %vm3526, %v998, %v3055
        %v3528 = vsel %vm3526, %v1134, %v3057
        %v3529 = vsel %vm3526, %v1542, %v3059
        %v3530 = vsel %vm3526, %v1678, %v3061
        %v3531 = vsel %vm3526, %v2086, %v3063
        %v3532 = vsel %vm3526, %v2222, %v3065
        %v3533 = vsel %vm3526, %v2630, %v3067
        %v3534 = vsel %vm3526, %v2766, %v3069
        %vm3535 = vcmask 31744
        %v3536 = vsel %vm3535, %v3527, %v3087
        %v3537 = vsel %vm3535, %v3528, %v3089
        %v3538 = vsel %vm3535, %v3529, %v3091
        %v3539 = vsel %vm3535, %v3530, %v3093
        %v3540 = vsel %vm3535, %v3531, %v3095
        %v3541 = vsel %vm3535, %v3532, %v3097
        %v3542 = vsel %vm3535, %v3533, %v3099
        %v3543 = vsel %vm3535, %v3534, %v3101
        %vm3544 = vcmask 48128
        %v3545 = vsel %vm3544, %v3536, %v3119
        %v3546 = vsel %vm3544, %v3537, %v3121
        %v3547 = vsel %vm3544, %v3538, %v3123
        %v3548 = vsel %vm3544, %v3539, %v3125
        %v3549 = vsel %vm3544, %v3540, %v3127
        %v3550 = vsel %vm3544, %v3541, %v3129
        %v3551 = vsel %vm3544, %v3542, %v3131
        %v3552 = vsel %vm3544, %v3543, %v3133
        %vm3553 = vcmask 64512
        %v3554 = vsel %vm3553, %v3545, %v3151
        %v3555 = vsel %vm3553, %v3546, %v3153
        %v3556 = vsel %vm3553, %v3547, %v3155
        %v3557 = vsel %vm3553, %v3548, %v3157
        %v3558 = vsel %vm3553, %v3549, %v3159
        %v3559 = vsel %vm3553, %v3550, %v3161
        %v3560 = vsel %vm3553, %v3551, %v3163
        %v3561 = vsel %vm3553, %v3552, %v3165
        %vm3562 = vcmask 80896
        %v3563 = vsel %vm3562, %v3554, %v3183
        %v3564 = vsel %vm3562, %v3555, %v3185
        %v3565 = vsel %vm3562, %v3556, %v3187
        %v3566 = vsel %vm3562, %v3557, %v3189
        %v3567 = vsel %vm3562, %v3558, %v3191
        %v3568 = vsel %vm3562, %v3559, %v3193
        %v3569 = vsel %vm3562, %v3560, %v3195
        %v3570 = vsel %vm3562, %v3561, %v3197
        %vm3571 = vcmask 97280
        %v3572 = vsel %vm3571, %v3563, %v3215
        %v3573 = vsel %vm3571, %v3564, %v3217
        %v3574 = vsel %vm3571, %v3565, %v3219
        %v3575 = vsel %vm3571, %v3566, %v3221
        %v3576 = vsel %vm3571, %v3567, %v3223
        %v3577 = vsel %vm3571, %v3568, %v3225
        %v3578 = vsel %vm3571, %v3569, %v3227
        %v3579 = vsel %vm3571, %v3570, %v3229
        %vm3580 = vcmask 113664
        %v3581 = vsel %vm3580, %v3572, %v3247
        %v3582 = vsel %vm3580, %v3573, %v3249
        %v3583 = vsel %vm3580, %v3574, %v3251
        %v3584 = vsel %vm3580, %v3575, %v3253
        %v3585 = vsel %vm3580, %v3576, %v3255
        %v3586 = vsel %vm3580, %v3577, %v3257
        %v3587 = vsel %vm3580, %v3578, %v3259
        %v3588 = vsel %vm3580, %v3579, %v3261
        %vm3589 = vcmask 130048
        %v3590 = vsel %vm3589, %v3581, %v3279
        %v3591 = vsel %vm3589, %v3582, %v3281
        %v3592 = vsel %vm3589, %v3583, %v3283
        %v3593 = vsel %vm3589, %v3584, %v3285
        %v3594 = vsel %vm3589, %v3585, %v3287
        %v3595 = vsel %vm3589, %v3586, %v3289
        %v3596 = vsel %vm3589, %v3587, %v3291
        %v3597 = vsel %vm3589, %v3588, %v3293
        %vm3598 = vcmask 146432
        %v3599 = vsel %vm3598, %v3590, %v3311
        %v3600 = vsel %vm3598, %v3591, %v3313
        %v3601 = vsel %vm3598, %v3592, %v3315
        %v3602 = vsel %vm3598, %v3593, %v3317
        %v3603 = vsel %vm3598, %v3594, %v3319
        %v3604 = vsel %vm3598, %v3595, %v3321
        %v3605 = vsel %vm3598, %v3596, %v3323
        %v3606 = vsel %vm3598, %v3597, %v3325
        %vm3607 = vcmask 162816
        %v3608 = vsel %vm3607, %v3599, %v3343
        %v3609 = vsel %vm3607, %v3600, %v3345
        %v3610 = vsel %vm3607, %v3601, %v3347
        %v3611 = vsel %vm3607, %v3602, %v3349
        %v3612 = vsel %vm3607, %v3603, %v3351
        %v3613 = vsel %vm3607, %v3604, %v3353
        %v3614 = vsel %vm3607, %v3605, %v3355
        %v3615 = vsel %vm3607, %v3606, %v3357
        %vm3616 = vcmask 179200
        %v3617 = vsel %vm3616, %v3608, %v3375
        %v3618 = vsel %vm3616, %v3609, %v3377
        %v3619 = vsel %vm3616, %v3610, %v3379
        %v3620 = vsel %vm3616, %v3611, %v3381
        %v3621 = vsel %vm3616, %v3612, %v3383
        %v3622 = vsel %vm3616, %v3613, %v3385
        %v3623 = vsel %vm3616, %v3614, %v3387
        %v3624 = vsel %vm3616, %v3615, %v3389
        %vm3625 = vcmask 195584
        %v3626 = vsel %vm3625, %v3617, %v3407
        %v3627 = vsel %vm3625, %v3618, %v3409
        %v3628 = vsel %vm3625, %v3619, %v3411
        %v3629 = vsel %vm3625, %v3620, %v3413
        %v3630 = vsel %vm3625, %v3621, %v3415
        %v3631 = vsel %vm3625, %v3622, %v3417
        %v3632 = vsel %vm3625, %v3623, %v3419
        %v3633 = vsel %vm3625, %v3624, %v3421
        %vm3634 = vcmask 211968
        %v3635 = vsel %vm3634, %v3626, %v3439
        %v3636 = vsel %vm3634, %v3627, %v3441
        %v3637 = vsel %vm3634, %v3628, %v3443
        %v3638 = vsel %vm3634, %v3629, %v3445
        %v3639 = vsel %vm3634, %v3630, %v3447
        %v3640 = vsel %vm3634, %v3631, %v3449
        %v3641 = vsel %vm3634, %v3632, %v3451
        %v3642 = vsel %vm3634, %v3633, %v3453
        %vm3643 = vcmask 228352
        %v3644 = vsel %vm3643, %v3635, %v3471
        %v3645 = vsel %vm3643, %v3636, %v3473
        %v3646 = vsel %vm3643, %v3637, %v3475
        %v3647 = vsel %vm3643, %v3638, %v3477
        %v3648 = vsel %vm3643, %v3639, %v3479
        %v3649 = vsel %vm3643, %v3640, %v3481
        %v3650 = vsel %vm3643, %v3641, %v3483
        %v3651 = vsel %vm3643, %v3642, %v3485
        %vm3652 = vcmask 244736
        %v3653 = vsel %vm3652, %v3644, %v3503
        %v3654 = vsel %vm3652, %v3645, %v3505
        %v3655 = vsel %vm3652, %v3646, %v3507
        %v3656 = vsel %vm3652, %v3647, %v3509
        %v3657 = vsel %vm3652, %v3648, %v3511
        %v3658 = vsel %vm3652, %v3649, %v3513
        %v3659 = vsel %vm3652, %v3650, %v3515
        %v3660 = vsel %vm3652, %v3651, %v3517
        %3661 = vst [vmem:[%s153] ss:$2 sm:$0xff] %v3653
        %s3662 = scalar_lea.vmem %s153, 16 [#allocation5]
        %3663 = vst [vmem:[%s3662] ss:$2 sm:$0xff] %v3654
        %s3664 = scalar_lea.vmem %s153, 32 [#allocation5]
        %3665 = vst [vmem:[%s3664] ss:$2 sm:$0xff] %v3655
        %s3666 = scalar_lea.vmem %s153, 48 [#allocation5]
        %3667 = vst [vmem:[%s3666] ss:$2 sm:$0xff] %v3656
        %s3668 = scalar_lea.vmem %s153, 64 [#allocation5]
        %3669 = vst [vmem:[%s3668] ss:$2 sm:$0xff] %v3657
        %s3670 = scalar_lea.vmem %s153, 80 [#allocation5]
        %3671 = vst [vmem:[%s3670] ss:$2 sm:$0xff] %v3658
        %s3672 = scalar_lea.vmem %s153, 96 [#allocation5]
        %3673 = vst [vmem:[%s3672] ss:$2 sm:$0xff] %v3659
        %s3674 = scalar_lea.vmem %s153, 112 [#allocation5]
        %3675 = vst [vmem:[%s3674] ss:$2 sm:$0xff] %v3660
        %s3676 = scalar_lea.vmem %s153, 1 [#allocation5]
        %3677 = vst [vmem:[%s3676] ss:$2 sm:$0xff] %v3653
        %s3678 = scalar_lea.vmem %s153, 17 [#allocation5]
        %3679 = vst [vmem:[%s3678] ss:$2 sm:$0xff] %v3654
        %s3680 = scalar_lea.vmem %s153, 33 [#allocation5]
        %3681 = vst [vmem:[%s3680] ss:$2 sm:$0xff] %v3655
        %s3682 = scalar_lea.vmem %s153, 49 [#allocation5]
        %3683 = vst [vmem:[%s3682] ss:$2 sm:$0xff] %v3656
        %s3684 = scalar_lea.vmem %s153, 65 [#allocation5]
        %3685 = vst [vmem:[%s3684] ss:$2 sm:$0xff] %v3657
        %s3686 = scalar_lea.vmem %s153, 81 [#allocation5]
        %3687 = vst [vmem:[%s3686] ss:$2 sm:$0xff] %v3658
        %s3688 = scalar_lea.vmem %s153, 97 [#allocation5]
        %3689 = vst [vmem:[%s3688] ss:$2 sm:$0xff] %v3659
        %s3690 = scalar_lea.vmem %s153, 113 [#allocation5]
        %3691 = vst [vmem:[%s3690] ss:$2 sm:$0xff] %v3660
        %s3692 = sand.u32 %s68, 1
        %s3693 = scalar_lea.sflag [#allocation4], %s3692
        %s3694 = sand.u32 %s68, 1
        %s3695 = smul.addr %s3694, 128
        %s3696 = scalar_lea.vmem [#allocation5], %s3695
        // Predicated region
        $region29: #{tpu_custom_call.1} parent=23 // pred_check
          %p3697 = pneg %p78
        $region30: #{tpu_custom_call.1} parent=23 // pred_check_branch
          %3699 = sbr.rel (%p3697) target = $region32
        $region31: #{tpu_custom_call.1} parent=23 // pred_region
          %s3700 = smul.u32 4, %s22
          %s3701 = smul.u32 4, %s23
          %s3703 = ssub.s32 2048, 2048
          %3704 = vsyncadd %s3693, %s3703
          %s3705 = smul.addr %s3700, 4
          %s3706 = sadd.s32 %s3701, %s3705
          %s3707 = smul.addr %s3706, 128
          %s3708 = scalar_lea.hbm %s1, %s3707
          %s3709 = sshll.u32 %s3696, 4
          %s3710 = int_to_ptr.vmem [resolvable:$true] %s3709
          %3715 = dma.vmem_to_hbm [thread:$0]  %s3710, 2048, %s3708, %s3693, 128, 128, 8
        $region32: #{tpu_custom_call.1} parent=23 // pred_fallthru
          _
      $region24: #{tpu_custom_call.1} parent=5 // pred_fallthru
        _
      %p3716 = scmp.le.s32.totalorder 2, %s13
      // Predicated region
      $region33: #{tpu_custom_call.1} parent=5 // pred_check
        %p3717 = pneg %p3716
      $region34: #{tpu_custom_call.1} parent=5 // pred_check_branch
        %3719 = sbr.rel (%p3717) target = $region36
      $region35: #{tpu_custom_call.1} parent=5 // pred_region
        %s3720 = ssub.s32 %s13, 2
        // Predicated region
        $region37: #{tpu_custom_call.1} parent=35 // pred_check
          %p3721 = pneg %p84
        $region38: #{tpu_custom_call.1} parent=35 // pred_check_branch
          %3723 = sbr.rel (%p3721) target = $region40
        $region39: #{tpu_custom_call.1} parent=35 // pred_region
          %s3724 = sand.u32 %s69, 1
          %s3725 = scalar_lea.sflag [#allocation4], %s3724
          %s3726 = sand.u32 %s69, 1
          %s3727 = smul.addr %s3726, 128
          %s3728 = scalar_lea.vmem [#allocation5], %s3727
          %3729 = dma.done %s3725, 2048
        $region40: #{tpu_custom_call.1} parent=35 // pred_fallthru
          _
      $region36: #{tpu_custom_call.1} parent=5 // pred_fallthru
        _
    $region6: #{tpu_custom_call.1} parent=1 // loop_footer
      %s17 = sadd.s32 1, %s13
    $region7: #{tpu_custom_call.1} parent=1 // loop_footer_branch
      %12 = sbr.rel target = $region3
    $region8: #{tpu_custom_call.1} parent=1 // loop_exit
      _
    %3730 = vsyncpa [#allocation3], 1
    %s3731 = scalar_lea.sflag [#allocation3], 1
    %3732 = vsyncpa %s3731, 1
    %3733 = vsyncpa [#allocation4], 1
    %s3734 = scalar_lea.sflag [#allocation4], 1
    %3735 = vsyncpa %s3734, 1

</llo_original>
